<compile_context>
chip_gen: v7x
topology: tpu7x:2x2x1
jax: 0.10.0
libtpu: 0.0.40
codegen_flags: <defaults>
</compile_context>

<pallas_src>
import math

import jax
import jax.numpy as jnp
from jax import lax
from jax.experimental import pallas as pl
from jax.experimental.pallas import tpu as pltpu

# ----------------------------- problem sizes ------------------------------
N = 2              # batch
NUM_PATCHES = 8    # local sequence length L
DIM = 32           # model dim (local_dim == global_dim)
NUM_HEADS = 8      # module default num_heads
DIM_HEAD = DIM // NUM_HEADS            # 4
H = W = 16                             # global feature spatial size (NCHW)
HP, WP = H // 4, W // 4                # adaptive-pool output spatial size
HW = H * W                             # 256 pre-pool pixels (lane-dense)
HWP = HP * WP                          # 16 pooled global tokens (L_global)
LN_EPS = 1e-5
NEG_INF = -1e30


# ------------------------------- kernel -----------------------------------
def cross_attn_kernel(local_ref, gfull_ref, pmt_ref, w_ref, b_ref,
                      bmask_ref, seg_ref, out_ref):
    bb, p, dim = local_ref.shape          # batch block, patches, model dim
    hw = gfull_ref.shape[2]
    hwp = pmt_ref.shape[1]
    nq = bb * p                           # stacked query rows
    nk = bb * hwp                         # stacked key/value rows
    nheads = seg_ref.shape[0] // nk

    local = local_ref[...].reshape(nq, dim)          # (bb*P, DIM)
    gfull = gfull_ref[...].reshape(bb * dim, hw)     # (bb*DIM, HW) channel-major

    # --- AdaptiveAvgPool2d((H/4, W/4)): one MXU matmul, lane-dense LHS ---
    pooled_t = jnp.dot(gfull, pmt_ref[...],
                       preferred_element_type=jnp.float32)       # (bb*DIM, HWP)
    # channel-major -> token-major, per batch (small 2-D transposes only)
    if bb == 1:
        pooled = pooled_t.T                                       # (HWP, DIM)
    else:
        pooled = jnp.concatenate(
            [pooled_t[i * dim:(i + 1) * dim, :].T for i in range(bb)],
            axis=0)                                               # (nk, DIM)

    # --- LayerNorm (gamma/beta folded into the projection weights) ---
    def center_norm(x):
        mu = jnp.mean(x, axis=-1, keepdims=True)
        xc = x - mu
        var = jnp.mean(xc * xc, axis=-1, keepdims=True)
        return xc * lax.rsqrt(var + LN_EPS)

    local_n = center_norm(local)          # (nq, DIM)
    global_n = center_norm(pooled)        # (nk, DIM)

    w = w_ref[...]                        # (DIM, 4*DIM)  [Wq*s | Wk | Wv | Wo]
    b = b_ref[...]                        # (4, DIM)      rows: bq*s, bk, bv, bo

    # --- fused Q|K|V projection: one MXU call on the stacked LHS rows ---
    lhs = jnp.concatenate([local_n, global_n], axis=0)            # (nq+nk, DIM)
    proj = jnp.dot(lhs, w[:, :3 * dim],
                   preferred_element_type=jnp.float32)            # (nq+nk, 3*DIM)
    q = proj[:nq, :dim] + b[0:1]                                  # (nq, DIM)
    k = proj[nq:, dim:2 * dim] + b[1:2]                           # (nk, DIM)
    v = proj[nq:, 2 * dim:3 * dim] + b[2:3]                       # (nk, DIM)

    # --- block-structured multi-head attention: every head (and every batch
    # element of the block) in two MXU calls.  `seg` is the precomputed 0/1
    # head mask: rows = (head, batch, token) score columns, cols = channels.
    seg = seg_ref[...]                                            # (sblk, DIM)
    k_blk = jnp.tile(k, (nheads, 1)) * seg                        # (sblk, DIM)
    s = lax.dot_general(q, k_blk, (((1,), (1,)), ((), ())),
                        preferred_element_type=jnp.float32)       # (nq, sblk)
    if bb > 1:
        s = s + bmask_ref[...]        # -1e30 on cross-batch score columns

    # per-head softmax; subtracting the row-global max is mathematically exact
    m = jnp.max(s, axis=-1, keepdims=True)
    e = jnp.exp(s - m)

    # [block-diag V | seg] as one RHS: a single MXU call yields both the
    # un-normalized attention output AND every head's softmax denominator.
    rhs = jnp.concatenate([jnp.tile(v, (nheads, 1)) * seg, seg],
                          axis=1)                                 # (sblk, 2*DIM)
    av = jnp.dot(e, rhs, preferred_element_type=jnp.float32)      # (nq, 2*DIM)
    attn = av[:, :dim] * pl.reciprocal(av[:, dim:], approx=True)  # (nq, DIM)

    # --- out projection + residual (residual uses the raw local input) ---
    out = jnp.dot(attn, w[:, 3 * dim:],
                  preferred_element_type=jnp.float32) + b[3:4]
    out_ref[...] = (local + out).reshape(bb, p, dim)


# ------------------------------- wrapper -----------------------------------
def _batch_block(n):
    """Batch elements per grid step: 1 on dual-TC v7x (parallel grid, one
    batch element per TensorCore); the full batch on single-TC v5e/v6e
    (collapse the grid, fold the batch into MXU rows)."""
    try:
        kind = jax.devices()[0].device_kind.lower()
    except Exception:
        kind = ""
    return 1 if "v7" in kind else n


def cross_attn(x_local, x_global, packed):
    n, p_, d_ = x_local.shape
    nb, c_, h_, w_ = x_global.shape
    assert (p_, d_, c_, h_, w_) == (NUM_PATCHES, DIM, DIM, H, W) and nb == n

    bb = packed["bb"]
    assert n % bb == 0
    steps = n // bb
    sblk = NUM_HEADS * bb * HWP

    # NCHW -> (N, DIM, H*W): contiguous reshape (no HBM transpose), lane-dense.
    gfull = x_global.reshape(n, DIM, HW)

    # constants use fixed block indices -> DMA'd once, stay VMEM-resident
    fixed2d = lambda shp: pl.BlockSpec(shp, lambda i: (0, 0))

    grid_spec = pltpu.PrefetchScalarGridSpec(
        num_scalar_prefetch=0,
        grid=(steps,),
        in_specs=[
            pl.BlockSpec((bb, NUM_PATCHES, DIM), lambda i: (i, 0, 0)),  # local
            pl.BlockSpec((bb, DIM, HW), lambda i: (i, 0, 0)),           # global px
            fixed2d((HW, HWP)),                                         # pool^T
            fixed2d((DIM, 4 * DIM)),                                    # W slab
            fixed2d((4, DIM)),                                          # b slab
            fixed2d((bb * NUM_PATCHES, sblk)),                          # batch mask
            fixed2d((sblk, DIM)),                                       # head seg
        ],
        out_specs=pl.BlockSpec((bb, NUM_PATCHES, DIM), lambda i: (i, 0, 0)),
    )

    fn = pl.pallas_call(
        cross_attn_kernel,
        out_shape=jax.ShapeDtypeStruct((n, NUM_PATCHES, DIM), jnp.float32),
        grid_spec=grid_spec,
        compiler_params=pltpu.CompilerParams(
            dimension_semantics=("parallel",),
        ),
    )
    return fn(x_local, gfull, packed["pm_t"], packed["wslab"], packed["bslab"],
              packed["bmask"], packed["seg"])


# --------------------- wrapper-side parameter packing -----------------------
def pack_params(params, bb):
    """Fold LayerNorm affine + 1/sqrt(dh) into weights; build slabs & masks."""
    scale = 1.0 / math.sqrt(DIM_HEAD)
    g_l, b_l = params["g_l"], params["b_l"]
    g_g, b_g = params["g_g"], params["b_g"]

    wq = (g_l[:, None] * params["wq"]) * scale
    bq = (b_l @ params["wq"] + params["bq"]) * scale
    wk = g_g[:, None] * params["wk"]
    bk = b_g @ params["wk"] + params["bk"]
    wv = g_g[:, None] * params["wv"]
    bv = b_g @ params["wv"] + params["bv"]

    wslab = jnp.concatenate([wq, wk, wv, params["wo"]], axis=1)     # (DIM, 4*DIM)
    bslab = jnp.stack([bq, bk, bv, params["bo"]], axis=0)           # (4, DIM)

    # transposed pooling matrix: pixel (y, x) -> pooled cell (y//4, x//4), 1/16
    # (adaptive pool == uniform 4x4 average; valid because H, W divisible by 4)
    ys, xs = jnp.meshgrid(jnp.arange(H), jnp.arange(W), indexing="ij")
    cell = (ys // 4) * WP + (xs // 4)                               # (H, W)
    pm_t = (cell.reshape(-1)[:, None] == jnp.arange(HWP)[None, :]
            ).astype(jnp.float32) / 16.0                            # (HW, HWP)

    # attention block-structure constants for a batch block of `bb`
    sblk = NUM_HEADS * bb * HWP
    col_head = jnp.arange(sblk) // (bb * HWP)            # head of score column
    col_batch = (jnp.arange(sblk) % (bb * HWP)) // HWP   # batch of score column
    chan_head = jnp.arange(DIM) // DIM_HEAD              # head of channel
    seg = (col_head[:, None] == chan_head[None, :]).astype(jnp.float32)  # (sblk, DIM)
    row_batch = jnp.arange(bb * NUM_PATCHES) // NUM_PATCHES
    bmask = jnp.where(row_batch[:, None] == col_batch[None, :],
                      0.0, NEG_INF).astype(jnp.float32)             # (bb*P, sblk)

    return dict(wslab=wslab, bslab=bslab, pm_t=pm_t,
                seg=seg, bmask=bmask, bb=bb)


# --------------------------- pure-JAX reference -----------------------------
def _layer_norm_ref(x, gamma, beta):
    mu = jnp.mean(x, axis=-1, keepdims=True)
    var = jnp.mean((x - mu) ** 2, axis=-1, keepdims=True)
    return (x - mu) * lax.rsqrt(var + LN_EPS) * gamma + beta


def reference(x_local, x_global, params):
    n = x_local.shape[0]
    pooled = x_global.reshape(n, DIM, HP, 4, WP, 4).mean(axis=(3, 5))   # (N,DIM,HP,WP)
    xg = jnp.transpose(pooled.reshape(n, DIM, HWP), (0, 2, 1))          # (N,HWP,DIM)

    xl_n = _layer_norm_ref(x_local, params["g_l"], params["b_l"])
    xg_n = _layer_norm_ref(xg, params["g_g"], params["b_g"])

    Q = xl_n @ params["wq"] + params["bq"]
    K = xg_n @ params["wk"] + params["bk"]
    V = xg_n @ params["wv"] + params["bv"]

    def split(x, L):
        return jnp.transpose(x.reshape(n, L, NUM_HEADS, DIM_HEAD), (0, 2, 1, 3))

    Qh, Kh, Vh = split(Q, NUM_PATCHES), split(K, HWP), split(V, HWP)
    scores = jnp.einsum("nhqd,nhkd->nhqk", Qh, Kh) / math.sqrt(DIM_HEAD)
    attn_w = jax.nn.softmax(scores, axis=-1)
    attn = jnp.einsum("nhqk,nhkd->nhqd", attn_w, Vh)
    attn = jnp.transpose(attn, (0, 2, 1, 3)).reshape(n, NUM_PATCHES, DIM)
    out = attn @ params["wo"] + params["bo"]
    return x_local + out


# ------------------------------ param init ----------------------------------
def init_params(key):
    ks = jax.random.split(key, 8)

    def linear(k, fi, fo):
        kw, kb = jax.random.split(k)
        bound = 1.0 / math.sqrt(fi)
        w = jax.random.uniform(kw, (fi, fo), jnp.float32, -bound, bound)
        b = jax.random.uniform(kb, (fo,), jnp.float32, -bound, bound)
        return w, b

    wq, bq = linear(ks[0], DIM, DIM)
    wk, bk = linear(ks[1], DIM, DIM)
    wv, bv = linear(ks[2], DIM, DIM)
    wo, bo = linear(ks[3], DIM, DIM)
    # non-trivial LayerNorm affine params so the weight folding is exercised
    g_l = 1.0 + 0.1 * jax.random.normal(ks[4], (DIM,), jnp.float32)
    b_l = 0.1 * jax.random.normal(ks[5], (DIM,), jnp.float32)
    g_g = 1.0 + 0.1 * jax.random.normal(ks[6], (DIM,), jnp.float32)
    b_g = 0.1 * jax.random.normal(ks[7], (DIM,), jnp.float32)
    return dict(wq=wq, bq=bq, wk=wk, bk=bk, wv=wv, bv=bv, wo=wo, bo=bo,
                g_l=g_l, b_l=b_l, g_g=g_g, b_g=b_g)


if __name__ == "__main__":
    key = jax.random.PRNGKey(0)
    k_local, k_global, k_params = jax.random.split(key, 3)

    x_local = jax.random.normal(k_local, (N, NUM_PATCHES, DIM), jnp.float32)
    x_global = jax.random.normal(k_global, (N, DIM, H, W), jnp.float32)
    params = init_params(k_params)

    bb = _batch_block(N)                 # grid collapse on v5e/v6e; (N,) on v7x
    packed = pack_params(params, bb)     # done once, outside the hot path

    out = jax.block_until_ready(cross_attn(x_local, x_global, packed))
    ref = jax.block_until_ready(reference(x_local, x_global, params))

    assert out.shape == (N, NUM_PATCHES, DIM)
    max_err = float(jnp.max(jnp.abs(out - ref)))
    # tolerance leaves headroom for the folded LN/scale weights and the
    # approximate (EUP-routed) softmax reciprocal
    assert jnp.allclose(out, ref, rtol=2e-3, atol=2e-3), max_err
    print("KERNEL_OK")
</pallas_src>

<mosaic_0001>
module attributes {stable_mosaic.version = 11 : i64} {
  func.func @cross_attn_kernel(%arg0: i32, %arg1: memref<2x8x32xf32, #tpu.memory_space<vmem>>, %arg2: memref<2x32x256xf32, #tpu.memory_space<vmem>>, %arg3: memref<256x16xf32, #tpu.memory_space<vmem>>, %arg4: memref<32x128xf32, #tpu.memory_space<vmem>>, %arg5: memref<4x32xf32, #tpu.memory_space<vmem>>, %arg6: memref<16x256xf32, #tpu.memory_space<vmem>>, %arg7: memref<256x32xf32, #tpu.memory_space<vmem>>, %arg8: memref<2x8x32xf32, #tpu.memory_space<vmem>>) attributes {dimension_semantics = [#tpu.dimension_semantics<parallel>], iteration_bounds = array<i64: 1>, scalar_prefetch = 0 : i64, scratch_operands = 0 : i64, tpu.core_type = #tpu.core_type<tc>, window_params = [{transform_indices = @transform_0, window_bounds = array<i64: 2, 8, 32>}, {transform_indices = @transform_1, window_bounds = array<i64: 2, 32, 256>}, {pipeline_mode = #tpu.pipeline_mode<synchronous>, transform_indices = @transform_2, window_bounds = array<i64: 256, 16>}, {pipeline_mode = #tpu.pipeline_mode<synchronous>, transform_indices = @transform_3, window_bounds = array<i64: 32, 128>}, {pipeline_mode = #tpu.pipeline_mode<synchronous>, transform_indices = @transform_4, window_bounds = array<i64: 4, 32>}, {pipeline_mode = #tpu.pipeline_mode<synchronous>, transform_indices = @transform_5, window_bounds = array<i64: 16, 256>}, {pipeline_mode = #tpu.pipeline_mode<synchronous>, transform_indices = @transform_6, window_bounds = array<i64: 256, 32>}, {transform_indices = @transform_7, window_bounds = array<i64: 2, 8, 32>}]} {
    %c0 = arith.constant 0 : index
    %c0_0 = arith.constant 0 : index
    %c0_1 = arith.constant 0 : index
    %0 = vector.load %arg1[%c0, %c0_0, %c0_1] : memref<2x8x32xf32, #tpu.memory_space<vmem>>, vector<2x8x32xf32>
    %1 = vector.shape_cast %0 : vector<2x8x32xf32> to vector<16x32xf32>
    %c0_2 = arith.constant 0 : index
    %c0_3 = arith.constant 0 : index
    %c0_4 = arith.constant 0 : index
    %2 = vector.load %arg2[%c0_2, %c0_3, %c0_4] : memref<2x32x256xf32, #tpu.memory_space<vmem>>, vector<2x32x256xf32>
    %3 = vector.shape_cast %2 : vector<2x32x256xf32> to vector<64x256xf32>
    %c0_5 = arith.constant 0 : index
    %c0_6 = arith.constant 0 : index
    %4 = vector.load %arg3[%c0_5, %c0_6] : memref<256x16xf32, #tpu.memory_space<vmem>>, vector<256x16xf32>
    %cst = arith.constant dense<0.000000e+00> : vector<64x16xf32>
    %5 = tpu.matmul %3, %4, %cst {dimension_numbers = #tpu.dot_dimension_numbers<[1], [0], [0], [1], [0, 0, 1, 1], [], []>} : vector<64x256xf32>, vector<256x16xf32>, vector<64x16xf32> -> vector<64x16xf32>
    %6 = vector.extract_strided_slice %5 {offsets = [0, 0], sizes = [32, 16], strides = [1, 1]} : vector<64x16xf32> to vector<32x16xf32>
    %7 = tpu.transpose %6, [1, 0] : vector<32x16xf32> -> vector<16x32xf32>
    %8 = vector.extract_strided_slice %5 {offsets = [32, 0], sizes = [32, 16], strides = [1, 1]} : vector<64x16xf32> to vector<32x16xf32>
    %9 = tpu.transpose %8, [1, 0] : vector<32x16xf32> -> vector<16x32xf32>
    %10 = tpu.concatenate %7, %9 in 0 : vector<16x32xf32>, vector<16x32xf32> -> vector<32x32xf32>
    %cst_7 = arith.constant dense<0.000000e+00> : vector<16xf32>
    %11 = vector.multi_reduction <add>, %1, %cst_7 [1] : vector<16x32xf32> to vector<16xf32>
    %12 = vector.shape_cast %11 : vector<16xf32> to vector<16x1xf32>
    %cst_8 = arith.constant 3.200000e+01 : f32
    %13 = vector.broadcast %cst_8 : f32 to vector<16x1xf32>
    %14 = arith.divf %12, %13 : vector<16x1xf32>
    %15 = vector.broadcast %14 : vector<16x1xf32> to vector<16x32xf32>
    %16 = arith.subf %1, %15 : vector<16x32xf32>
    %17 = arith.mulf %16, %16 : vector<16x32xf32>
    %cst_9 = arith.constant dense<0.000000e+00> : vector<16xf32>
    %18 = vector.multi_reduction <add>, %17, %cst_9 [1] : vector<16x32xf32> to vector<16xf32>
    %19 = vector.shape_cast %18 : vector<16xf32> to vector<16x1xf32>
    %cst_10 = arith.constant 3.200000e+01 : f32
    %20 = vector.broadcast %cst_10 : f32 to vector<16x1xf32>
    %21 = arith.divf %19, %20 : vector<16x1xf32>
    %cst_11 = arith.constant 9.99999974E-6 : f32
    %22 = vector.broadcast %cst_11 : f32 to vector<16x1xf32>
    %23 = arith.addf %21, %22 : vector<16x1xf32>
    %24 = math.rsqrt %23 : vector<16x1xf32>
    %25 = vector.broadcast %24 : vector<16x1xf32> to vector<16x32xf32>
    %26 = arith.mulf %16, %25 : vector<16x32xf32>
    %cst_12 = arith.constant dense<0.000000e+00> : vector<32xf32>
    %27 = vector.multi_reduction <add>, %10, %cst_12 [1] : vector<32x32xf32> to vector<32xf32>
    %28 = vector.shape_cast %27 : vector<32xf32> to vector<32x1xf32>
    %cst_13 = arith.constant 3.200000e+01 : f32
    %29 = vector.broadcast %cst_13 : f32 to vector<32x1xf32>
    %30 = arith.divf %28, %29 : vector<32x1xf32>
    %31 = vector.broadcast %30 : vector<32x1xf32> to vector<32x32xf32>
    %32 = arith.subf %10, %31 : vector<32x32xf32>
    %33 = arith.mulf %32, %32 : vector<32x32xf32>
    %cst_14 = arith.constant dense<0.000000e+00> : vector<32xf32>
    %34 = vector.multi_reduction <add>, %33, %cst_14 [1] : vector<32x32xf32> to vector<32xf32>
    %35 = vector.shape_cast %34 : vector<32xf32> to vector<32x1xf32>
    %cst_15 = arith.constant 3.200000e+01 : f32
    %36 = vector.broadcast %cst_15 : f32 to vector<32x1xf32>
    %37 = arith.divf %35, %36 : vector<32x1xf32>
    %cst_16 = arith.constant 9.99999974E-6 : f32
    %38 = vector.broadcast %cst_16 : f32 to vector<32x1xf32>
    %39 = arith.addf %37, %38 : vector<32x1xf32>
    %40 = math.rsqrt %39 : vector<32x1xf32>
    %41 = vector.broadcast %40 : vector<32x1xf32> to vector<32x32xf32>
    %42 = arith.mulf %32, %41 : vector<32x32xf32>
    %c0_17 = arith.constant 0 : index
    %c0_18 = arith.constant 0 : index
    %43 = vector.load %arg4[%c0_17, %c0_18] : memref<32x128xf32, #tpu.memory_space<vmem>>, vector<32x128xf32>
    %c0_19 = arith.constant 0 : index
    %c0_20 = arith.constant 0 : index
    %44 = vector.load %arg5[%c0_19, %c0_20] : memref<4x32xf32, #tpu.memory_space<vmem>>, vector<4x32xf32>
    %45 = tpu.concatenate %26, %42 in 0 : vector<16x32xf32>, vector<32x32xf32> -> vector<48x32xf32>
    %46 = vector.extract_strided_slice %43 {offsets = [0, 0], sizes = [32, 96], strides = [1, 1]} : vector<32x128xf32> to vector<32x96xf32>
    %cst_21 = arith.constant dense<0.000000e+00> : vector<48x96xf32>
    %47 = tpu.matmul %45, %46, %cst_21 {dimension_numbers = #tpu.dot_dimension_numbers<[1], [0], [0], [1], [0, 0, 1, 1], [], []>} : vector<48x32xf32>, vector<32x96xf32>, vector<48x96xf32> -> vector<48x96xf32>
    %48 = vector.extract_strided_slice %47 {offsets = [0, 0], sizes = [16, 32], strides = [1, 1]} : vector<48x96xf32> to vector<16x32xf32>
    %49 = vector.extract_strided_slice %44 {offsets = [0, 0], sizes = [1, 32], strides = [1, 1]} : vector<4x32xf32> to vector<1x32xf32>
    %50 = vector.broadcast %49 : vector<1x32xf32> to vector<16x32xf32>
    %51 = arith.addf %48, %50 : vector<16x32xf32>
    %52 = vector.extract_strided_slice %47 {offsets = [16, 32], sizes = [32, 32], strides = [1, 1]} : vector<48x96xf32> to vector<32x32xf32>
    %53 = vector.extract_strided_slice %44 {offsets = [1, 0], sizes = [1, 32], strides = [1, 1]} : vector<4x32xf32> to vector<1x32xf32>
    %54 = vector.broadcast %53 : vector<1x32xf32> to vector<32x32xf32>
    %55 = arith.addf %52, %54 : vector<32x32xf32>
    %56 = vector.extract_strided_slice %47 {offsets = [16, 64], sizes = [32, 32], strides = [1, 1]} : vector<48x96xf32> to vector<32x32xf32>
    %57 = vector.extract_strided_slice %44 {offsets = [2, 0], sizes = [1, 32], strides = [1, 1]} : vector<4x32xf32> to vector<1x32xf32>
    %58 = vector.broadcast %57 : vector<1x32xf32> to vector<32x32xf32>
    %59 = arith.addf %56, %58 : vector<32x32xf32>
    %c0_22 = arith.constant 0 : index
    %c0_23 = arith.constant 0 : index
    %60 = vector.load %arg7[%c0_22, %c0_23] : memref<256x32xf32, #tpu.memory_space<vmem>>, vector<256x32xf32>
    %61 = tpu.concatenate %55, %55, %55, %55, %55, %55, %55, %55 in 0 : vector<32x32xf32>, vector<32x32xf32>, vector<32x32xf32>, vector<32x32xf32>, vector<32x32xf32>, vector<32x32xf32>, vector<32x32xf32>, vector<32x32xf32> -> vector<256x32xf32>
    %62 = arith.mulf %61, %60 : vector<256x32xf32>
    %cst_24 = arith.constant dense<0.000000e+00> : vector<16x256xf32>
    %63 = tpu.matmul %51, %62, %cst_24 {dimension_numbers = #tpu.dot_dimension_numbers<[1], [1], [0], [0], [0, 0, 1, 0], [], []>} : vector<16x32xf32>, vector<256x32xf32>, vector<16x256xf32> -> vector<16x256xf32>
    %c0_25 = arith.constant 0 : index
    %c0_26 = arith.constant 0 : index
    %64 = vector.load %arg6[%c0_25, %c0_26] : memref<16x256xf32, #tpu.memory_space<vmem>>, vector<16x256xf32>
    %65 = arith.addf %63, %64 : vector<16x256xf32>
    %cst_27 = arith.constant dense<0xFF800000> : vector<16xf32>
    %66 = vector.multi_reduction <maximumf>, %65, %cst_27 [1] : vector<16x256xf32> to vector<16xf32>
    %67 = vector.shape_cast %66 : vector<16xf32> to vector<16x1xf32>
    %68 = vector.broadcast %67 : vector<16x1xf32> to vector<16x256xf32>
    %69 = arith.subf %65, %68 : vector<16x256xf32>
    %70 = math.exp %69 : vector<16x256xf32>
    %71 = tpu.concatenate %59, %59, %59, %59, %59, %59, %59, %59 in 0 : vector<32x32xf32>, vector<32x32xf32>, vector<32x32xf32>, vector<32x32xf32>, vector<32x32xf32>, vector<32x32xf32>, vector<32x32xf32>, vector<32x32xf32> -> vector<256x32xf32>
    %72 = arith.mulf %71, %60 : vector<256x32xf32>
    %73 = tpu.concatenate %72, %60 in 1 : vector<256x32xf32>, vector<256x32xf32> -> vector<256x64xf32>
    %cst_28 = arith.constant dense<0.000000e+00> : vector<16x64xf32>
    %74 = tpu.matmul %70, %73, %cst_28 {dimension_numbers = #tpu.dot_dimension_numbers<[1], [0], [0], [1], [0, 0, 1, 1], [], []>} : vector<16x256xf32>, vector<256x64xf32>, vector<16x64xf32> -> vector<16x64xf32>
    %75 = vector.extract_strided_slice %74 {offsets = [0, 0], sizes = [16, 32], strides = [1, 1]} : vector<16x64xf32> to vector<16x32xf32>
    %76 = vector.extract_strided_slice %74 {offsets = [0, 32], sizes = [16, 32], strides = [1, 1]} : vector<16x64xf32> to vector<16x32xf32>
    %77 = tpu.reciprocal %76 {approx = true} : vector<16x32xf32> -> vector<16x32xf32>
    %78 = arith.mulf %75, %77 : vector<16x32xf32>
    %79 = vector.extract_strided_slice %43 {offsets = [0, 96], sizes = [32, 32], strides = [1, 1]} : vector<32x128xf32> to vector<32x32xf32>
    %cst_29 = arith.constant dense<0.000000e+00> : vector<16x32xf32>
    %80 = tpu.matmul %78, %79, %cst_29 {dimension_numbers = #tpu.dot_dimension_numbers<[1], [0], [0], [1], [0, 0, 1, 1], [], []>} : vector<16x32xf32>, vector<32x32xf32>, vector<16x32xf32> -> vector<16x32xf32>
    %81 = vector.extract_strided_slice %44 {offsets = [3, 0], sizes = [1, 32], strides = [1, 1]} : vector<4x32xf32> to vector<1x32xf32>
    %82 = vector.broadcast %81 : vector<1x32xf32> to vector<16x32xf32>
    %83 = arith.addf %80, %82 : vector<16x32xf32>
    %84 = arith.addf %1, %83 : vector<16x32xf32>
    %85 = vector.shape_cast %84 : vector<16x32xf32> to vector<2x8x32xf32>
    %c0_30 = arith.constant 0 : index
    %c0_31 = arith.constant 0 : index
    %c0_32 = arith.constant 0 : index
    %86 = vector.load %arg8[%c0_30, %c0_31, %c0_32] : memref<2x8x32xf32, #tpu.memory_space<vmem>>, vector<2x8x32xf32>
    tpu.vector_store %arg8[%c0_30, %c0_31, %c0_32], %85 {strides = array<i32>} : memref<2x8x32xf32, #tpu.memory_space<vmem>>, vector<2x8x32xf32>,
    return
  }
  func.func @transform_0(%arg0: i32) -> (i32, i32, i32) {
    %c0_i32 = arith.constant 0 : i32
    %c0_i32_0 = arith.constant 0 : i32
    %c0_i32_1 = arith.constant 0 : i32
    return %arg0, %c0_i32, %c0_i32_0 : i32, i32, i32
  }
  func.func @transform_1(%arg0: i32) -> (i32, i32, i32) {
    %c0_i32 = arith.constant 0 : i32
    %c0_i32_0 = arith.constant 0 : i32
    %c0_i32_1 = arith.constant 0 : i32
    return %arg0, %c0_i32, %c0_i32_0 : i32, i32, i32
  }
  func.func @transform_2(%arg0: i32) -> (i32, i32) {
    %c0_i32 = arith.constant 0 : i32
    %c0_i32_0 = arith.constant 0 : i32
    %c0_i32_1 = arith.constant 0 : i32
    return %c0_i32, %c0_i32_0 : i32, i32
  }
  func.func @transform_3(%arg0: i32) -> (i32, i32) {
    %c0_i32 = arith.constant 0 : i32
    %c0_i32_0 = arith.constant 0 : i32
    %c0_i32_1 = arith.constant 0 : i32
    return %c0_i32, %c0_i32_0 : i32, i32
  }
  func.func @transform_4(%arg0: i32) -> (i32, i32) {
    %c0_i32 = arith.constant 0 : i32
    %c0_i32_0 = arith.constant 0 : i32
    %c0_i32_1 = arith.constant 0 : i32
    return %c0_i32, %c0_i32_0 : i32, i32
  }
  func.func @transform_5(%arg0: i32) -> (i32, i32) {
    %c0_i32 = arith.constant 0 : i32
    %c0_i32_0 = arith.constant 0 : i32
    %c0_i32_1 = arith.constant 0 : i32
    return %c0_i32, %c0_i32_0 : i32, i32
  }
  func.func @transform_6(%arg0: i32) -> (i32, i32) {
    %c0_i32 = arith.constant 0 : i32
    %c0_i32_0 = arith.constant 0 : i32
    %c0_i32_1 = arith.constant 0 : i32
    return %c0_i32, %c0_i32_0 : i32, i32
  }
  func.func @transform_7(%arg0: i32) -> (i32, i32, i32) {
    %c0_i32 = arith.constant 0 : i32
    %c0_i32_0 = arith.constant 0 : i32
    %c0_i32_1 = arith.constant 0 : i32
    return %arg0, %c0_i32, %c0_i32_0 : i32, i32, i32
  }
}

</mosaic_0001>

<llo_original>
// kernel: tpu_custom_call.1
$region0: #{tpu_custom_call.1}
  #allocation0 [shape = 'u32[]', space=smem, size = 0x4, offset = 0x4, fixed_abs, tag = 'smem constant byte address 0x4 - core index']
  #allocation1 [shape = 'u32[144,128]{1,0:T(1,128)}', space=vmem, size = 0x12000, scoped, tag = 'internal scratch']
  %s0 = inlined_call_operand.vmem [shape: f32[2,8,32], index: 0, kind: input, shape index: {}]
  %s1 = inlined_call_operand.vmem [shape: f32[2,32,256], index: 1, kind: input, shape index: {}]
  %s2 = inlined_call_operand.vmem [shape: f32[256,16], index: 2, kind: input, shape index: {}]
  %s3 = inlined_call_operand.vmem [shape: f32[32,128], index: 3, kind: input, shape index: {}]
  %s4 = inlined_call_operand.vmem [shape: f32[4,32], index: 4, kind: input, shape index: {}]
  %s5 = inlined_call_operand.vmem [shape: f32[16,256], index: 5, kind: input, shape index: {}]
  %s6 = inlined_call_operand.vmem [shape: f32[256,32], index: 6, kind: input, shape index: {}]
  %s7 = inlined_call_operand.hbm [shape: f32[2,8,32], index: 7, kind: output, shape index: {}]
  %s8 = sld [smem:[#allocation0]]
  $region38: #{tpu_custom_call.1} parent=0
    _
  %s10 = ssub.s32 1, %s8
  %s11 = scalar_select 0, %s10, %s8
  $region1: #{tpu_custom_call.1} parent=0
    #allocation2 [shape = 'u8[8192]{0}', space=vmem, size = 0x2000, scoped, tag = 'output window, operand 0, single buffered']
    #allocation3 [shape = 's32[1]{0}', space=sflag, size = 0x4, scoped, tag = 'scoped memory for tpu_custom_call.1']
    %12 = vsyncpa [#allocation3], 0
    // Predicated region
    $region2: #{tpu_custom_call.1} parent=1 // pred_check
      _
    $region3: #{tpu_custom_call.1} parent=1 // pred_check_branch
      %14 = sbr.rel (0) target = $region5
    $region4: #{tpu_custom_call.1} parent=1 // pred_region
      _
    $region5: #{tpu_custom_call.1} parent=1 // pred_fallthru
      _
    // Predicated region
    $region6: #{tpu_custom_call.1} parent=1 // pred_check
      _
    $region7: #{tpu_custom_call.1} parent=1 // pred_check_branch
      %16 = sbr.rel (0) target = $region9
    $region8: #{tpu_custom_call.1} parent=1 // pred_region
      _
    $region9: #{tpu_custom_call.1} parent=1 // pred_fallthru
      _
    // Predicated region
    $region10: #{tpu_custom_call.1} parent=1 // pred_check
      _
    $region11: #{tpu_custom_call.1} parent=1 // pred_check_branch
      %18 = sbr.rel (0) target = $region13
    $region12: #{tpu_custom_call.1} parent=1 // pred_region
      _
    $region13: #{tpu_custom_call.1} parent=1 // pred_fallthru
      _
    // Predicated region
    $region14: #{tpu_custom_call.1} parent=1 // pred_check
      _
    $region15: #{tpu_custom_call.1} parent=1 // pred_check_branch
      %20 = sbr.rel (0) target = $region17
    $region16: #{tpu_custom_call.1} parent=1 // pred_region
      _
    $region17: #{tpu_custom_call.1} parent=1 // pred_fallthru
      _
    // Predicated region
    $region18: #{tpu_custom_call.1} parent=1 // pred_check
      _
    $region19: #{tpu_custom_call.1} parent=1 // pred_check_branch
      %22 = sbr.rel (0) target = $region21
    $region20: #{tpu_custom_call.1} parent=1 // pred_region
      _
    $region21: #{tpu_custom_call.1} parent=1 // pred_fallthru
      _
    // Predicated region
    $region22: #{tpu_custom_call.1} parent=1 // pred_check
      _
    $region23: #{tpu_custom_call.1} parent=1 // pred_check_branch
      %24 = sbr.rel (0) target = $region25
    $region24: #{tpu_custom_call.1} parent=1 // pred_region
      _
    $region25: #{tpu_custom_call.1} parent=1 // pred_fallthru
      _
    // Predicated region
    $region26: #{tpu_custom_call.1} parent=1 // pred_check
      _
    $region27: #{tpu_custom_call.1} parent=1 // pred_check_branch
      %26 = sbr.rel (0) target = $region29
    $region28: #{tpu_custom_call.1} parent=1 // pred_region
      _
    $region29: #{tpu_custom_call.1} parent=1 // pred_fallthru
      _
    %v27 = vld [vmem:[%s0] sm:$0xff]
    %v28 = vld [vmem:[%s0 + $0x8] sm:$0xff]
    %v29 = vld [vmem:[%s1] sm:$0xff]
    %v30 = vld [vmem:[%s1 + $0x8] sm:$0xff]
    %v31 = vld [vmem:[%s1 + $0x10] sm:$0xff]
    %v32 = vld [vmem:[%s1 + $0x18] sm:$0xff]
    %v33 = vld [vmem:[%s1 + $0x20] sm:$0xff]
    %v34 = vld [vmem:[%s1 + $0x28] sm:$0xff]
    %v35 = vld [vmem:[%s1 + $0x30] sm:$0xff]
    %v36 = vld [vmem:[%s1 + $0x38] sm:$0xff]
    %v37 = vld [vmem:[%s1 + $0x40] sm:$0xff]
    %v38 = vld [vmem:[%s1 + $0x48] sm:$0xff]
    %v39 = vld [vmem:[%s1 + $0x50] sm:$0xff]
    %v40 = vld [vmem:[%s1 + $0x58] sm:$0xff]
    %v41 = vld [vmem:[%s1 + $0x60] sm:$0xff]
    %v42 = vld [vmem:[%s1 + $0x68] sm:$0xff]
    %v43 = vld [vmem:[%s1 + $0x70] sm:$0xff]
    %v44 = vld [vmem:[%s1 + $0x78] sm:$0xff]
    %v45 = vld [vmem:[%s2] sm:$0xff]
    %v46 = vld [vmem:[%s2 + $0x8] sm:$0xff]
    %v47 = vld [vmem:[%s2 + $0x10] sm:$0xff]
    %v48 = vld [vmem:[%s2 + $0x18] sm:$0xff]
    %v49 = vld [vmem:[%s2 + $0x20] sm:$0xff]
    %v50 = vld [vmem:[%s2 + $0x28] sm:$0xff]
    %v51 = vld [vmem:[%s2 + $0x30] sm:$0xff]
    %v52 = vld [vmem:[%s2 + $0x38] sm:$0xff]
    %v53 = vld [vmem:[%s2 + $0x40] sm:$0xff]
    %v54 = vld [vmem:[%s2 + $0x48] sm:$0xff]
    %v55 = vld [vmem:[%s2 + $0x50] sm:$0xff]
    %v56 = vld [vmem:[%s2 + $0x58] sm:$0xff]
    %v57 = vld [vmem:[%s2 + $0x60] sm:$0xff]
    %v58 = vld [vmem:[%s2 + $0x68] sm:$0xff]
    %v59 = vld [vmem:[%s2 + $0x70] sm:$0xff]
    %v60 = vld [vmem:[%s2 + $0x78] sm:$0xff]
    %v61 = vld [vmem:[%s2 + $0x80] sm:$0xff]
    %v62 = vld [vmem:[%s2 + $0x88] sm:$0xff]
    %v63 = vld [vmem:[%s2 + $0x90] sm:$0xff]
    %v64 = vld [vmem:[%s2 + $0x98] sm:$0xff]
    %v65 = vld [vmem:[%s2 + $0xa0] sm:$0xff]
    %v66 = vld [vmem:[%s2 + $0xa8] sm:$0xff]
    %v67 = vld [vmem:[%s2 + $0xb0] sm:$0xff]
    %v68 = vld [vmem:[%s2 + $0xb8] sm:$0xff]
    %v69 = vld [vmem:[%s2 + $0xc0] sm:$0xff]
    %v70 = vld [vmem:[%s2 + $0xc8] sm:$0xff]
    %v71 = vld [vmem:[%s2 + $0xd0] sm:$0xff]
    %v72 = vld [vmem:[%s2 + $0xd8] sm:$0xff]
    %v73 = vld [vmem:[%s2 + $0xe0] sm:$0xff]
    %v74 = vld [vmem:[%s2 + $0xe8] sm:$0xff]
    %v75 = vld [vmem:[%s2 + $0xf0] sm:$0xff]
    %v76 = vld [vmem:[%s2 + $0xf8] sm:$0xff]
    %77 = vmatprep.subr.mxu0 0.0
    %78 = vmatpush1.msra.mxu0 %v45
    %79 = vmatprep.subr.mxu0 0.0
    %80 = vmatpush1.msra.mxu0 %v46
    %81 = vmatprep.subr.mxu0 0.0
    %82 = vmatpush1.msra.mxu0 %v47
    %83 = vmatprep.subr.mxu0 0.0
    %84 = vmatpush1.msra.mxu0 %v48
    %85 = vmatprep.subr.mxu0 0.0
    %86 = vmatpush1.msra.mxu0 %v49
    %87 = vmatprep.subr.mxu0 0.0
    %88 = vmatpush1.msra.mxu0 %v50
    %89 = vmatprep.subr.mxu0 0.0
    %90 = vmatpush1.msra.mxu0 %v51
    %91 = vmatprep.subr.mxu0 0.0
    %92 = vmatpush1.msra.mxu0 %v52
    %93 = vmatprep.subr.mxu0 0.0
    %94 = vmatpush1.msra.mxu0 %v53
    %95 = vmatprep.subr.mxu0 0.0
    %96 = vmatpush1.msra.mxu0 %v54
    %97 = vmatprep.subr.mxu0 0.0
    %98 = vmatpush1.msra.mxu0 %v55
    %99 = vmatprep.subr.mxu0 0.0
    %100 = vmatpush1.msra.mxu0 %v56
    %101 = vmatprep.subr.mxu0 0.0
    %102 = vmatpush1.msra.mxu0 %v57
    %103 = vmatprep.subr.mxu0 0.0
    %104 = vmatpush1.msra.mxu0 %v58
    %105 = vmatprep.subr.mxu0 0.0
    %106 = vmatpush1.msra.mxu0 %v59
    %107 = vmatprep.subr.mxu0 0.0
    %108 = vmatpush1.msra.mxu0 %v60
    %109 = vmatprep.subr.mxu0 0.0
    %110 = vmatpush1.msra.mxu0 %v61
    %111 = vmatprep.subr.mxu0 0.0
    %112 = vmatpush1.msra.mxu0 %v62
    %113 = vmatprep.subr.mxu0 0.0
    %114 = vmatpush1.msra.mxu0 %v63
    %115 = vmatprep.subr.mxu0 0.0
    %116 = vmatpush1.msra.mxu0 %v64
    %117 = vmatprep.subr.mxu0 0.0
    %118 = vmatpush1.msra.mxu0 %v65
    %119 = vmatprep.subr.mxu0 0.0
    %120 = vmatpush1.msra.mxu0 %v66
    %121 = vmatprep.subr.mxu0 0.0
    %122 = vmatpush1.msra.mxu0 %v67
    %123 = vmatprep.subr.mxu0 0.0
    %124 = vmatpush1.msra.mxu0 %v68
    %125 = vmatprep.subr.mxu0 0.0
    %126 = vmatpush1.msra.mxu0 %v69
    %127 = vmatprep.subr.mxu0 0.0
    %128 = vmatpush1.msra.mxu0 %v70
    %129 = vmatprep.subr.mxu0 0.0
    %130 = vmatpush1.msra.mxu0 %v71
    %131 = vmatprep.subr.mxu0 0.0
    %132 = vmatpush1.msra.mxu0 %v72
    %133 = vmatprep.subr.mxu0 0.0
    %134 = vmatpush1.msra.mxu0 %v73
    %135 = vmatprep.subr.mxu0 0.0
    %136 = vmatpush1.msra.mxu0 %v74
    %137 = vmatprep.subr.mxu0 0.0
    %138 = vmatpush1.msra.mxu0 %v75
    %139 = vmatprep.subr.mxu0 0.0
    %140 = vmatpush1.msra.mxu0 %v76
    %141 = vmatprep.mubr.f32.mxu0 %v30
    %142 = vmatmul.mubr.f32.gmra.mrb[0].mxu0 %v29
    %v143 = vpop.f32.mrb[0].mxu0
    %v144 = vadd.f32 0.0, %v143
    %v145 = vpop.f32.mrb[0].mxu0
    %146 = vmatprep.mubr.f32.mxu0 %v32
    %147 = vmatmul.mubr.f32.gmra.mrb[0].mxu0 %v31
    %v148 = vpop.f32.mrb[0].mxu0
    %v149 = vadd.f32 0.0, %v148
    %v150 = vpop.f32.mrb[0].mxu0
    %151 = vmatprep.mubr.f32.mxu0 %v34
    %152 = vmatmul.mubr.f32.gmra.mrb[0].mxu0 %v33
    %v153 = vpop.f32.mrb[0].mxu0
    %v154 = vadd.f32 0.0, %v153
    %v155 = vpop.f32.mrb[0].mxu0
    %156 = vmatprep.mubr.f32.mxu0 %v36
    %157 = vmatmul.mubr.f32.gmra.mrb[0].mxu0 %v35
    %v158 = vpop.f32.mrb[0].mxu0
    %v159 = vadd.f32 0.0, %v158
    %v160 = vpop.f32.mrb[0].mxu0
    %161 = vmatprep.mubr.f32.mxu0 %v38
    %162 = vmatmul.mubr.f32.gmra.mrb[0].mxu0 %v37
    %v163 = vpop.f32.mrb[0].mxu0
    %v164 = vadd.f32 0.0, %v163
    %v165 = vpop.f32.mrb[0].mxu0
    %166 = vmatprep.mubr.f32.mxu0 %v40
    %167 = vmatmul.mubr.f32.gmra.mrb[0].mxu0 %v39
    %v168 = vpop.f32.mrb[0].mxu0
    %v169 = vadd.f32 0.0, %v168
    %v170 = vpop.f32.mrb[0].mxu0
    %171 = vmatprep.mubr.f32.mxu0 %v42
    %172 = vmatmul.mubr.f32.gmra.mrb[0].mxu0 %v41
    %v173 = vpop.f32.mrb[0].mxu0
    %v174 = vadd.f32 0.0, %v173
    %v175 = vpop.f32.mrb[0].mxu0
    %176 = vmatprep.mubr.f32.mxu0 %v44
    %177 = vmatmul.mubr.f32.gmra.mrb[0].mxu0 %v43
    %v178 = vpop.f32.mrb[0].mxu0
    %v179 = vadd.f32 0.0, %v178
    %v180 = vpop.f32.mrb[0].mxu0
    %181 = vdwg.mxu0
    %182 = vxpose.xlu0.b32.start [1/16] %v144, 128
    %183 = vxpose.xlu0.b32.cont [2/16] %v149, 128
    %184 = vxpose.xlu0.b32.cont [3/16] %v154, 128
    %185 = vxpose.xlu0.b32.cont [4/16] %v159, 128
    %186 = vxpose.xlu0.b32.cont [5/16] 0.0, 128
    %187 = vxpose.xlu0.b32.cont [6/16] 0.0, 128
    %188 = vxpose.xlu0.b32.cont [7/16] 0.0, 128
    %189 = vxpose.xlu0.b32.cont [8/16] 0.0, 128
    %190 = vxpose.xlu0.b32.cont [9/16] 0.0, 128
    %191 = vxpose.xlu0.b32.cont [10/16] 0.0, 128
    %192 = vxpose.xlu0.b32.cont [11/16] 0.0, 128
    %193 = vxpose.xlu0.b32.cont [12/16] 0.0, 128
    %194 = vxpose.xlu0.b32.cont [13/16] 0.0, 128
    %195 = vxpose.xlu0.b32.cont [14/16] 0.0, 128
    %196 = vxpose.xlu0.b32.cont [15/16] 0.0, 128
    %197 = vxpose.xlu0.b32.end [16/16] 0.0, 128
    %v198 = vpop.trf.xlu0
    %v199 = vpop.trf.xlu0
    %v200 = vpop.trf.xlu0
    %v201 = vpop.trf.xlu0
    %v202 = vpop.trf.xlu0
    %v203 = vpop.trf.xlu0
    %v204 = vpop.trf.xlu0
    %v205 = vpop.trf.xlu0
    %v206 = vpop.trf.xlu0
    %v207 = vpop.trf.xlu0
    %v208 = vpop.trf.xlu0
    %v209 = vpop.trf.xlu0
    %v210 = vpop.trf.xlu0
    %v211 = vpop.trf.xlu0
    %v212 = vpop.trf.xlu0
    %v213 = vpop.trf.xlu0
    %214 = vxpose.xlu0.b32.start [1/16] %v164, 128
    %215 = vxpose.xlu0.b32.cont [2/16] %v169, 128
    %216 = vxpose.xlu0.b32.cont [3/16] %v174, 128
    %217 = vxpose.xlu0.b32.cont [4/16] %v179, 128
    %218 = vxpose.xlu0.b32.cont [5/16] 0.0, 128
    %219 = vxpose.xlu0.b32.cont [6/16] 0.0, 128
    %220 = vxpose.xlu0.b32.cont [7/16] 0.0, 128
    %221 = vxpose.xlu0.b32.cont [8/16] 0.0, 128
    %222 = vxpose.xlu0.b32.cont [9/16] 0.0, 128
    %223 = vxpose.xlu0.b32.cont [10/16] 0.0, 128
    %224 = vxpose.xlu0.b32.cont [11/16] 0.0, 128
    %225 = vxpose.xlu0.b32.cont [12/16] 0.0, 128
    %226 = vxpose.xlu0.b32.cont [13/16] 0.0, 128
    %227 = vxpose.xlu0.b32.cont [14/16] 0.0, 128
    %228 = vxpose.xlu0.b32.cont [15/16] 0.0, 128
    %229 = vxpose.xlu0.b32.end [16/16] 0.0, 128
    %v230 = vpop.trf.xlu0
    %v231 = vpop.trf.xlu0
    %v232 = vpop.trf.xlu0
    %v233 = vpop.trf.xlu0
    %v234 = vpop.trf.xlu0
    %v235 = vpop.trf.xlu0
    %v236 = vpop.trf.xlu0
    %v237 = vpop.trf.xlu0
    %v238 = vpop.trf.xlu0
    %v239 = vpop.trf.xlu0
    %v240 = vpop.trf.xlu0
    %v241 = vpop.trf.xlu0
    %v242 = vpop.trf.xlu0
    %v243 = vpop.trf.xlu0
    %v244 = vpop.trf.xlu0
    %v245 = vpop.trf.xlu0
    %vm246 = vcmask 261120
    %v247 = vsel %vm246, %v27, 0.0
    %248 = vadd.xlane.f32.xlu0 %v247
    %v249 = vpop.xlane.xlu0 %248
    %v250 = vsel %vm246, %v28, 0.0
    %251 = vadd.xlane.f32.xlu0 %v250
    %v252 = vpop.xlane.xlu0 %251
    %v253 = vrcp.pop 32.0
    %v254 = vmul.f32 %v249, %v253
    %v255 = vmul.f32 %v252, %v253
    %v256 = vsub.f32 %v27, %v254
    %v257 = vsub.f32 %v28, %v255
    %v258 = vmul.f32 %v256, %v256
    %v259 = vmul.f32 %v257, %v257
    %v260 = vsel %vm246, %v258, 0.0
    %261 = vadd.xlane.f32.xlu0 %v260
    %v262 = vpop.xlane.xlu0 %261
    %v263 = vsel %vm246, %v259, 0.0
    %264 = vadd.xlane.f32.xlu0 %v263
    %v265 = vpop.xlane.xlu0 %264
    %v266 = vmul.f32 %v262, %v253
    %v267 = vmul.f32 %v265, %v253
    %v268 = vadd.f32 %v266, 1e-05
    %v269 = vadd.f32 %v267, 1e-05
    %v270 = vrsqrt.pop %v268
    %v271 = vrsqrt.pop %v269
    %v272 = vmul.f32 %v256, %v270
    %v273 = vmul.f32 %v257, %v271
    %v274 = vsel %vm246, %v198, 0.0
    %275 = vadd.xlane.f32.xlu0 %v274
    %v276 = vpop.xlane.xlu0 %275
    %v277 = vsel %vm246, %v199, 0.0
    %278 = vadd.xlane.f32.xlu0 %v277
    %v279 = vpop.xlane.xlu0 %278
    %v280 = vsel %vm246, %v230, 0.0
    %281 = vadd.xlane.f32.xlu0 %v280
    %v282 = vpop.xlane.xlu0 %281
    %v283 = vsel %vm246, %v231, 0.0
    %284 = vadd.xlane.f32.xlu0 %v283
    %v285 = vpop.xlane.xlu0 %284
    %v286 = vmul.f32 %v276, %v253
    %v287 = vmul.f32 %v279, %v253
    %v288 = vmul.f32 %v282, %v253
    %v289 = vmul.f32 %v285, %v253
    %v290 = vsub.f32 %v198, %v286
    %v291 = vsub.f32 %v199, %v287
    %v292 = vsub.f32 %v230, %v288
    %v293 = vsub.f32 %v231, %v289
    %v294 = vmul.f32 %v290, %v290
    %v295 = vmul.f32 %v291, %v291
    %v296 = vmul.f32 %v292, %v292
    %v297 = vmul.f32 %v293, %v293
    %v298 = vsel %vm246, %v294, 0.0
    %299 = vadd.xlane.f32.xlu0 %v298
    %v300 = vpop.xlane.xlu0 %299
    %v301 = vsel %vm246, %v295, 0.0
    %302 = vadd.xlane.f32.xlu0 %v301
    %v303 = vpop.xlane.xlu0 %302
    %v304 = vsel %vm246, %v296, 0.0
    %305 = vadd.xlane.f32.xlu0 %v304
    %v306 = vpop.xlane.xlu0 %305
    %v307 = vsel %vm246, %v297, 0.0
    %308 = vadd.xlane.f32.xlu0 %v307
    %v309 = vpop.xlane.xlu0 %308
    %v310 = vmul.f32 %v300, %v253
    %v311 = vmul.f32 %v303, %v253
    %v312 = vmul.f32 %v306, %v253
    %v313 = vmul.f32 %v309, %v253
    %v314 = vadd.f32 %v310, 1e-05
    %v315 = vadd.f32 %v311, 1e-05
    %v316 = vadd.f32 %v312, 1e-05
    %v317 = vadd.f32 %v313, 1e-05
    %v318 = vrsqrt.pop %v314
    %v319 = vrsqrt.pop %v315
    %v320 = vrsqrt.pop %v316
    %v321 = vrsqrt.pop %v317
    %v322 = vmul.f32 %v290, %v318
    %v323 = vmul.f32 %v291, %v319
    %v324 = vmul.f32 %v292, %v320
    %v325 = vmul.f32 %v293, %v321
    %v326 = vld [vmem:[%s3] sm:$0xff]
    %v327 = vld [vmem:[%s3 + $0x8] sm:$0xff]
    %v328 = vld [vmem:[%s3 + $0x10] sm:$0xff]
    %v329 = vld [vmem:[%s3 + $0x18] sm:$0xff]
    %v330 = vld [vmem:[%s4] sm:$0xf]
    %v332 = vsel %vm246, %v272, 0
    %v335 = vsel %vm246, %v273, 0
    %v338 = vsel %vm246, %v322, 0
    %v341 = vsel %vm246, %v323, 0
    %v344 = vsel %vm246, %v324, 0
    %v347 = vsel %vm246, %v325, 0
    %349 = vmatprep.subr.mxu0 0.0
    %350 = vmatpush1.msra.mxu0 %v326
    %351 = vmatprep.subr.mxu0 0.0
    %352 = vmatpush1.msra.mxu0 %v327
    %353 = vmatprep.subr.mxu0 0.0
    %354 = vmatpush1.msra.mxu0 %v328
    %355 = vmatprep.subr.mxu0 0.0
    %356 = vmatpush1.msra.mxu0 %v329
    %357 = vmatprep.subr.mxu0 0.0
    %358 = vmatpush1.msra.mxu0 0.0
    %359 = vmatprep.subr.mxu0 0.0
    %360 = vmatpush1.msra.mxu0 0.0
    %361 = vmatprep.subr.mxu0 0.0
    %362 = vmatpush1.msra.mxu0 0.0
    %363 = vmatprep.subr.mxu0 0.0
    %364 = vmatpush1.msra.mxu0 0.0
    %365 = vmatprep.subr.mxu0 0.0
    %366 = vmatpush1.msra.mxu0 0.0
    %367 = vmatprep.subr.mxu0 0.0
    %368 = vmatpush1.msra.mxu0 0.0
    %369 = vmatprep.subr.mxu0 0.0
    %370 = vmatpush1.msra.mxu0 0.0
    %371 = vmatprep.subr.mxu0 0.0
    %372 = vmatpush1.msra.mxu0 0.0
    %373 = vmatprep.subr.mxu0 0.0
    %374 = vmatpush1.msra.mxu0 0.0
    %375 = vmatprep.subr.mxu0 0.0
    %376 = vmatpush1.msra.mxu0 0.0
    %377 = vmatprep.subr.mxu0 0.0
    %378 = vmatpush1.msra.mxu0 0.0
    %379 = vmatprep.subr.mxu0 0.0
    %380 = vmatpush1.msra.mxu0 0.0
    %381 = vmatprep.subr.mxu0 0.0
    %382 = vmatpush1.msra.mxu0 0.0
    %383 = vmatprep.subr.mxu0 0.0
    %384 = vmatpush1.msra.mxu0 0.0
    %385 = vmatprep.subr.mxu0 0.0
    %386 = vmatpush1.msra.mxu0 0.0
    %387 = vmatprep.subr.mxu0 0.0
    %388 = vmatpush1.msra.mxu0 0.0
    %389 = vmatprep.subr.mxu0 0.0
    %390 = vmatpush1.msra.mxu0 0.0
    %391 = vmatprep.subr.mxu0 0.0
    %392 = vmatpush1.msra.mxu0 0.0
    %393 = vmatprep.subr.mxu0 0.0
    %394 = vmatpush1.msra.mxu0 0.0
    %395 = vmatprep.subr.mxu0 0.0
    %396 = vmatpush1.msra.mxu0 0.0
    %397 = vmatprep.subr.mxu0 0.0
    %398 = vmatpush1.msra.mxu0 0.0
    %399 = vmatprep.subr.mxu0 0.0
    %400 = vmatpush1.msra.mxu0 0.0
    %401 = vmatprep.subr.mxu0 0.0
    %402 = vmatpush1.msra.mxu0 0.0
    %403 = vmatprep.subr.mxu0 0.0
    %404 = vmatpush1.msra.mxu0 0.0
    %405 = vmatprep.subr.mxu0 0.0
    %406 = vmatpush1.msra.mxu0 0.0
    %407 = vmatprep.subr.mxu0 0.0
    %408 = vmatpush1.msra.mxu0 0.0
    %409 = vmatprep.subr.mxu0 0.0
    %410 = vmatpush1.msra.mxu0 0.0
    %411 = vmatprep.subr.mxu0 0.0
    %412 = vmatpush1.msra.mxu0 0.0
    %413 = vmatprep.mubr.f32.mxu0 0.0
    %414 = vmatmul.mubr.f32.gmra.mrb[0].mxu0 %v332
    %v415 = vpop.f32.mrb[0].mxu0
    %v416 = vadd.f32 0.0, %v415
    %v417 = vpop.f32.mrb[0].mxu0
    %418 = vmatprep.mubr.f32.mxu0 0.0
    %419 = vmatmul.mubr.f32.gmra.mrb[0].mxu0 %v335
    %v420 = vpop.f32.mrb[0].mxu0
    %v421 = vadd.f32 0.0, %v420
    %v422 = vpop.f32.mrb[0].mxu0
    %423 = vmatprep.mubr.f32.mxu0 0.0
    %424 = vmatmul.mubr.f32.gmra.mrb[0].mxu0 %v338
    %v425 = vpop.f32.mrb[0].mxu0
    %v426 = vadd.f32 0.0, %v425
    %v427 = vpop.f32.mrb[0].mxu0
    %428 = vmatprep.mubr.f32.mxu0 0.0
    %429 = vmatmul.mubr.f32.gmra.mrb[0].mxu0 %v341
    %v430 = vpop.f32.mrb[0].mxu0
    %v431 = vadd.f32 0.0, %v430
    %v432 = vpop.f32.mrb[0].mxu0
    %433 = vmatprep.mubr.f32.mxu0 0.0
    %434 = vmatmul.mubr.f32.gmra.mrb[0].mxu0 %v344
    %v435 = vpop.f32.mrb[0].mxu0
    %v436 = vadd.f32 0.0, %v435
    %v437 = vpop.f32.mrb[0].mxu0
    %438 = vmatprep.mubr.f32.mxu0 0.0
    %439 = vmatmul.mubr.f32.gmra.mrb[0].mxu0 %v347
    %v440 = vpop.f32.mrb[0].mxu0
    %v441 = vadd.f32 0.0, %v440
    %v442 = vpop.f32.mrb[0].mxu0
    %443 = vdwg.mxu0
    %v444 = vlaneseq
    %v445 = vshrl.u32 %v444, 7
    %v446 = vsub.s32 0, %v445
    %v447 = vrot.slane %v330, %v446
    %v448 = vadd.f32 %v416, %v447
    %v449 = vadd.f32 %v421, %v447
    %v450 = vlaneseq
    %v451 = vshrl.u32 %v450, 7
    %v452 = vsub.s32 1, %v451
    %v453 = vrot.slane %v330, %v452
    %455 = vrot.lane.b32.xlu0 %v453, 32
    %v456 = vpop.permute.xlu0 %455
    %v458 = vadd.f32 %v426, %v456
    %v459 = vadd.f32 %v431, %v456
    %v460 = vadd.f32 %v436, %v456
    %v461 = vadd.f32 %v441, %v456
    %v462 = vlaneseq
    %v463 = vshrl.u32 %v462, 7
    %v464 = vsub.s32 2, %v463
    %v465 = vrot.slane %v330, %v464
    %467 = vrot.lane.b32.xlu0 %v465, 64
    %v468 = vpop.permute.xlu0 %467
    %v470 = vadd.f32 %v426, %v468
    %v471 = vadd.f32 %v431, %v468
    %v472 = vadd.f32 %v436, %v468
    %v473 = vadd.f32 %v441, %v468
    %v474 = vld [vmem:[%s6] sm:$0xff]
    %v475 = vld [vmem:[%s6 + $0x8] sm:$0xff]
    %v476 = vld [vmem:[%s6 + $0x10] sm:$0xff]
    %v477 = vld [vmem:[%s6 + $0x18] sm:$0xff]
    %v478 = vld [vmem:[%s6 + $0x20] sm:$0xff]
    %v479 = vld [vmem:[%s6 + $0x28] sm:$0xff]
    %v480 = vld [vmem:[%s6 + $0x30] sm:$0xff]
    %v481 = vld [vmem:[%s6 + $0x38] sm:$0xff]
    %v482 = vld [vmem:[%s6 + $0x40] sm:$0xff]
    %v483 = vld [vmem:[%s6 + $0x48] sm:$0xff]
    %v484 = vld [vmem:[%s6 + $0x50] sm:$0xff]
    %v485 = vld [vmem:[%s6 + $0x58] sm:$0xff]
    %v486 = vld [vmem:[%s6 + $0x60] sm:$0xff]
    %v487 = vld [vmem:[%s6 + $0x68] sm:$0xff]
    %v488 = vld [vmem:[%s6 + $0x70] sm:$0xff]
    %v489 = vld [vmem:[%s6 + $0x78] sm:$0xff]
    %v490 = vld [vmem:[%s6 + $0x80] sm:$0xff]
    %v491 = vld [vmem:[%s6 + $0x88] sm:$0xff]
    %v492 = vld [vmem:[%s6 + $0x90] sm:$0xff]
    %v493 = vld [vmem:[%s6 + $0x98] sm:$0xff]
    %v494 = vld [vmem:[%s6 + $0xa0] sm:$0xff]
    %v495 = vld [vmem:[%s6 + $0xa8] sm:$0xff]
    %v496 = vld [vmem:[%s6 + $0xb0] sm:$0xff]
    %v497 = vld [vmem:[%s6 + $0xb8] sm:$0xff]
    %v498 = vld [vmem:[%s6 + $0xc0] sm:$0xff]
    %v499 = vld [vmem:[%s6 + $0xc8] sm:$0xff]
    %v500 = vld [vmem:[%s6 + $0xd0] sm:$0xff]
    %v501 = vld [vmem:[%s6 + $0xd8] sm:$0xff]
    %v502 = vld [vmem:[%s6 + $0xe0] sm:$0xff]
    %v503 = vld [vmem:[%s6 + $0xe8] sm:$0xff]
    %v504 = vld [vmem:[%s6 + $0xf0] sm:$0xff]
    %v505 = vld [vmem:[%s6 + $0xf8] sm:$0xff]
    %538 = vrot.lane.b32.xlu0 %v474, 32
    %v539 = vpop.permute.xlu0 %538
    %540 = vrot.lane.b32.xlu0 %v475, 32
    %v541 = vpop.permute.xlu0 %540
    %542 = vrot.lane.b32.xlu0 %v476, 32
    %v543 = vpop.permute.xlu0 %542
    %544 = vrot.lane.b32.xlu0 %v477, 32
    %v545 = vpop.permute.xlu0 %544
    %546 = vrot.lane.b32.xlu0 %v478, 32
    %v547 = vpop.permute.xlu0 %546
    %548 = vrot.lane.b32.xlu0 %v479, 32
    %v549 = vpop.permute.xlu0 %548
    %550 = vrot.lane.b32.xlu0 %v480, 32
    %v551 = vpop.permute.xlu0 %550
    %552 = vrot.lane.b32.xlu0 %v481, 32
    %v553 = vpop.permute.xlu0 %552
    %554 = vrot.lane.b32.xlu0 %v482, 32
    %v555 = vpop.permute.xlu0 %554
    %556 = vrot.lane.b32.xlu0 %v483, 32
    %v557 = vpop.permute.xlu0 %556
    %558 = vrot.lane.b32.xlu0 %v484, 32
    %v559 = vpop.permute.xlu0 %558
    %560 = vrot.lane.b32.xlu0 %v485, 32
    %v561 = vpop.permute.xlu0 %560
    %562 = vrot.lane.b32.xlu0 %v486, 32
    %v563 = vpop.permute.xlu0 %562
    %564 = vrot.lane.b32.xlu0 %v487, 32
    %v565 = vpop.permute.xlu0 %564
    %566 = vrot.lane.b32.xlu0 %v488, 32
    %v567 = vpop.permute.xlu0 %566
    %568 = vrot.lane.b32.xlu0 %v489, 32
    %v569 = vpop.permute.xlu0 %568
    %570 = vrot.lane.b32.xlu0 %v490, 32
    %v571 = vpop.permute.xlu0 %570
    %572 = vrot.lane.b32.xlu0 %v491, 32
    %v573 = vpop.permute.xlu0 %572
    %574 = vrot.lane.b32.xlu0 %v492, 32
    %v575 = vpop.permute.xlu0 %574
    %576 = vrot.lane.b32.xlu0 %v493, 32
    %v577 = vpop.permute.xlu0 %576
    %578 = vrot.lane.b32.xlu0 %v494, 32
    %v579 = vpop.permute.xlu0 %578
    %580 = vrot.lane.b32.xlu0 %v495, 32
    %v581 = vpop.permute.xlu0 %580
    %582 = vrot.lane.b32.xlu0 %v496, 32
    %v583 = vpop.permute.xlu0 %582
    %584 = vrot.lane.b32.xlu0 %v497, 32
    %v585 = vpop.permute.xlu0 %584
    %586 = vrot.lane.b32.xlu0 %v498, 32
    %v587 = vpop.permute.xlu0 %586
    %588 = vrot.lane.b32.xlu0 %v499, 32
    %v589 = vpop.permute.xlu0 %588
    %590 = vrot.lane.b32.xlu0 %v500, 32
    %v591 = vpop.permute.xlu0 %590
    %592 = vrot.lane.b32.xlu0 %v501, 32
    %v593 = vpop.permute.xlu0 %592
    %594 = vrot.lane.b32.xlu0 %v502, 32
    %v595 = vpop.permute.xlu0 %594
    %596 = vrot.lane.b32.xlu0 %v503, 32
    %v597 = vpop.permute.xlu0 %596
    %598 = vrot.lane.b32.xlu0 %v504, 32
    %v599 = vpop.permute.xlu0 %598
    %600 = vrot.lane.b32.xlu0 %v505, 32
    %v601 = vpop.permute.xlu0 %600
    %v634 = vmul.f32 %v458, %v539
    %v635 = vmul.f32 %v459, %v541
    %v636 = vmul.f32 %v460, %v543
    %v637 = vmul.f32 %v461, %v545
    %v638 = vmul.f32 %v458, %v547
    %v639 = vmul.f32 %v459, %v549
    %v640 = vmul.f32 %v460, %v551
    %v641 = vmul.f32 %v461, %v553
    %v642 = vmul.f32 %v458, %v555
    %v643 = vmul.f32 %v459, %v557
    %v644 = vmul.f32 %v460, %v559
    %v645 = vmul.f32 %v461, %v561
    %v646 = vmul.f32 %v458, %v563
    %v647 = vmul.f32 %v459, %v565
    %v648 = vmul.f32 %v460, %v567
    %v649 = vmul.f32 %v461, %v569
    %v650 = vmul.f32 %v458, %v571
    %v651 = vmul.f32 %v459, %v573
    %v652 = vmul.f32 %v460, %v575
    %v653 = vmul.f32 %v461, %v577
    %v654 = vmul.f32 %v458, %v579
    %v655 = vmul.f32 %v459, %v581
    %v656 = vmul.f32 %v460, %v583
    %v657 = vmul.f32 %v461, %v585
    %v658 = vmul.f32 %v458, %v587
    %v659 = vmul.f32 %v459, %v589
    %v660 = vmul.f32 %v460, %v591
    %v661 = vmul.f32 %v461, %v593
    %v662 = vmul.f32 %v458, %v595
    %v663 = vmul.f32 %v459, %v597
    %v664 = vmul.f32 %v460, %v599
    %v665 = vmul.f32 %v461, %v601
    %v666 = vld [vmem:[%s5] sm:$0xff]
    %v667 = vld [vmem:[%s5 + $0x8] sm:$0xff]
    %v668 = vld [vmem:[%s5 + $0x10] sm:$0xff]
    %v669 = vld [vmem:[%s5 + $0x18] sm:$0xff]
    %702 = vrot.lane.b32.xlu0 %v634, 96
    %v703 = vpop.permute.xlu0 %702
    %704 = vrot.lane.b32.xlu0 %v635, 96
    %v705 = vpop.permute.xlu0 %704
    %706 = vrot.lane.b32.xlu0 %v636, 96
    %v707 = vpop.permute.xlu0 %706
    %708 = vrot.lane.b32.xlu0 %v637, 96
    %v709 = vpop.permute.xlu0 %708
    %710 = vrot.lane.b32.xlu0 %v638, 96
    %v711 = vpop.permute.xlu0 %710
    %712 = vrot.lane.b32.xlu0 %v639, 96
    %v713 = vpop.permute.xlu0 %712
    %714 = vrot.lane.b32.xlu0 %v640, 96
    %v715 = vpop.permute.xlu0 %714
    %716 = vrot.lane.b32.xlu0 %v641, 96
    %v717 = vpop.permute.xlu0 %716
    %718 = vrot.lane.b32.xlu0 %v642, 96
    %v719 = vpop.permute.xlu0 %718
    %720 = vrot.lane.b32.xlu0 %v643, 96
    %v721 = vpop.permute.xlu0 %720
    %722 = vrot.lane.b32.xlu0 %v644, 96
    %v723 = vpop.permute.xlu0 %722
    %724 = vrot.lane.b32.xlu0 %v645, 96
    %v725 = vpop.permute.xlu0 %724
    %726 = vrot.lane.b32.xlu0 %v646, 96
    %v727 = vpop.permute.xlu0 %726
    %728 = vrot.lane.b32.xlu0 %v647, 96
    %v729 = vpop.permute.xlu0 %728
    %730 = vrot.lane.b32.xlu0 %v648, 96
    %v731 = vpop.permute.xlu0 %730
    %732 = vrot.lane.b32.xlu0 %v649, 96
    %v733 = vpop.permute.xlu0 %732
    %734 = vrot.lane.b32.xlu0 %v650, 96
    %v735 = vpop.permute.xlu0 %734
    %736 = vrot.lane.b32.xlu0 %v651, 96
    %v737 = vpop.permute.xlu0 %736
    %738 = vrot.lane.b32.xlu0 %v652, 96
    %v739 = vpop.permute.xlu0 %738
    %740 = vrot.lane.b32.xlu0 %v653, 96
    %v741 = vpop.permute.xlu0 %740
    %742 = vrot.lane.b32.xlu0 %v654, 96
    %v743 = vpop.permute.xlu0 %742
    %744 = vrot.lane.b32.xlu0 %v655, 96
    %v745 = vpop.permute.xlu0 %744
    %746 = vrot.lane.b32.xlu0 %v656, 96
    %v747 = vpop.permute.xlu0 %746
    %748 = vrot.lane.b32.xlu0 %v657, 96
    %v749 = vpop.permute.xlu0 %748
    %750 = vrot.lane.b32.xlu0 %v658, 96
    %v751 = vpop.permute.xlu0 %750
    %752 = vrot.lane.b32.xlu0 %v659, 96
    %v753 = vpop.permute.xlu0 %752
    %754 = vrot.lane.b32.xlu0 %v660, 96
    %v755 = vpop.permute.xlu0 %754
    %756 = vrot.lane.b32.xlu0 %v661, 96
    %v757 = vpop.permute.xlu0 %756
    %758 = vrot.lane.b32.xlu0 %v662, 96
    %v759 = vpop.permute.xlu0 %758
    %760 = vrot.lane.b32.xlu0 %v663, 96
    %v761 = vpop.permute.xlu0 %760
    %762 = vrot.lane.b32.xlu0 %v664, 96
    %v763 = vpop.permute.xlu0 %762
    %764 = vrot.lane.b32.xlu0 %v665, 96
    %v765 = vpop.permute.xlu0 %764
    %v767 = vsel %vm246, %v448, 0
    %v770 = vsel %vm246, %v449, 0
    %v772 = vsel %vm246, %v703, 0
    %v774 = vsel %vm246, %v705, 0
    %v776 = vsel %vm246, %v707, 0
    %v778 = vsel %vm246, %v709, 0
    %v780 = vsel %vm246, %v711, 0
    %v782 = vsel %vm246, %v713, 0
    %v784 = vsel %vm246, %v715, 0
    %v786 = vsel %vm246, %v717, 0
    %v788 = vsel %vm246, %v719, 0
    %v790 = vsel %vm246, %v721, 0
    %v792 = vsel %vm246, %v723, 0
    %v794 = vsel %vm246, %v725, 0
    %v796 = vsel %vm246, %v727, 0
    %v798 = vsel %vm246, %v729, 0
    %v800 = vsel %vm246, %v731, 0
    %v802 = vsel %vm246, %v733, 0
    %v804 = vsel %vm246, %v735, 0
    %v806 = vsel %vm246, %v737, 0
    %v808 = vsel %vm246, %v739, 0
    %v810 = vsel %vm246, %v741, 0
    %v812 = vsel %vm246, %v743, 0
    %v814 = vsel %vm246, %v745, 0
    %v816 = vsel %vm246, %v747, 0
    %v818 = vsel %vm246, %v749, 0
    %v820 = vsel %vm246, %v751, 0
    %v822 = vsel %vm246, %v753, 0
    %v824 = vsel %vm246, %v755, 0
    %v826 = vsel %vm246, %v757, 0
    %v828 = vsel %vm246, %v759, 0
    %v830 = vsel %vm246, %v761, 0
    %v832 = vsel %vm246, %v763, 0
    %v834 = vsel %vm246, %v765, 0
    %836 = vmatprep.subr.mxu0 0.0
    %837 = vmatpush1.xpose.msra.mxu0 %v772
    %838 = vmatprep.subr.mxu0 0.0
    %839 = vmatpush1.xpose.msra.mxu0 %v774
    %840 = vmatprep.subr.mxu0 0.0
    %841 = vmatpush1.xpose.msra.mxu0 %v776
    %842 = vmatprep.subr.mxu0 0.0
    %843 = vmatpush1.xpose.msra.mxu0 %v778
    %844 = vmatprep.subr.mxu0 0.0
    %845 = vmatpush1.xpose.msra.mxu0 %v780
    %846 = vmatprep.subr.mxu0 0.0
    %847 = vmatpush1.xpose.msra.mxu0 %v782
    %848 = vmatprep.subr.mxu0 0.0
    %849 = vmatpush1.xpose.msra.mxu0 %v784
    %850 = vmatprep.subr.mxu0 0.0
    %851 = vmatpush1.xpose.msra.mxu0 %v786
    %852 = vmatprep.subr.mxu0 0.0
    %853 = vmatpush1.xpose.msra.mxu0 %v788
    %854 = vmatprep.subr.mxu0 0.0
    %855 = vmatpush1.xpose.msra.mxu0 %v790
    %856 = vmatprep.subr.mxu0 0.0
    %857 = vmatpush1.xpose.msra.mxu0 %v792
    %858 = vmatprep.subr.mxu0 0.0
    %859 = vmatpush1.xpose.msra.mxu0 %v794
    %860 = vmatprep.subr.mxu0 0.0
    %861 = vmatpush1.xpose.msra.mxu0 %v796
    %862 = vmatprep.subr.mxu0 0.0
    %863 = vmatpush1.xpose.msra.mxu0 %v798
    %864 = vmatprep.subr.mxu0 0.0
    %865 = vmatpush1.xpose.msra.mxu0 %v800
    %866 = vmatprep.subr.mxu0 0.0
    %867 = vmatpush1.xpose.msra.mxu0 %v802
    %868 = vmatprep.subr.mxu0 0.0
    %869 = vmatpush1.xpose.msra.mxu0 %v804
    %870 = vmatprep.subr.mxu0 0.0
    %871 = vmatpush1.xpose.msra.mxu0 %v806
    %872 = vmatprep.subr.mxu0 0.0
    %873 = vmatpush1.xpose.msra.mxu0 %v808
    %874 = vmatprep.subr.mxu0 0.0
    %875 = vmatpush1.xpose.msra.mxu0 %v810
    %876 = vmatprep.subr.mxu0 0.0
    %877 = vmatpush1.xpose.msra.mxu0 %v812
    %878 = vmatprep.subr.mxu0 0.0
    %879 = vmatpush1.xpose.msra.mxu0 %v814
    %880 = vmatprep.subr.mxu0 0.0
    %881 = vmatpush1.xpose.msra.mxu0 %v816
    %882 = vmatprep.subr.mxu0 0.0
    %883 = vmatpush1.xpose.msra.mxu0 %v818
    %884 = vmatprep.subr.mxu0 0.0
    %885 = vmatpush1.xpose.msra.mxu0 %v820
    %886 = vmatprep.subr.mxu0 0.0
    %887 = vmatpush1.xpose.msra.mxu0 %v822
    %888 = vmatprep.subr.mxu0 0.0
    %889 = vmatpush1.xpose.msra.mxu0 %v824
    %890 = vmatprep.subr.mxu0 0.0
    %891 = vmatpush1.xpose.msra.mxu0 %v826
    %892 = vmatprep.subr.mxu0 0.0
    %893 = vmatpush1.xpose.msra.mxu0 %v828
    %894 = vmatprep.subr.mxu0 0.0
    %895 = vmatpush1.xpose.msra.mxu0 %v830
    %896 = vmatprep.subr.mxu0 0.0
    %897 = vmatpush1.xpose.msra.mxu0 %v832
    %898 = vmatprep.subr.mxu0 0.0
    %899 = vmatpush1.xpose.msra.mxu0 %v834
    %900 = vmatprep.mubr.f32.mxu0 0.0
    %901 = vmatmul.mubr.f32.gmra.mrb[0].mxu0 %v767
    %v902 = vpop.f32.mrb[0].mxu0
    %v903 = vadd.f32 %v666, %v902
    %v904 = vpop.f32.mrb[0].mxu0
    %v905 = vadd.f32 %v667, %v904
    %906 = vmatprep.mubr.f32.mxu0 0.0
    %907 = vmatmul.mubr.f32.gmra.mrb[0].mxu0 %v770
    %v908 = vpop.f32.mrb[0].mxu0
    %v909 = vadd.f32 %v668, %v908
    %v910 = vpop.f32.mrb[0].mxu0
    %v911 = vadd.f32 %v669, %v910
    %912 = vdwg.mxu0
    %v913 = vmax.f32 %v903, %v905
    %914 = vmax.xlane.f32.xlu0 %v913
    %v915 = vpop.xlane.xlu0 %914
    %v916 = vmax.f32 %v909, %v911
    %917 = vmax.xlane.f32.xlu0 %v916
    %v918 = vpop.xlane.xlu0 %917
    %v919 = vsub.f32 %v903, %v915
    %v920 = vsub.f32 %v905, %v915
    %v921 = vsub.f32 %v909, %v918
    %v922 = vsub.f32 %v911, %v918
    %v923 = vmul.f32 %v919, 1.442695
    %v924 = vpow.pop %v923
    %v925 = vmul.f32 %v920, 1.442695
    %v926 = vpow.pop %v925
    %v927 = vmul.f32 %v921, 1.442695
    %v928 = vpow.pop %v927
    %v929 = vmul.f32 %v922, 1.442695
    %v930 = vpow.pop %v929
    %931 = vrot.lane.b32.xlu0 %v474, 64
    %v932 = vpop.permute.xlu0 %931
    %933 = vrot.lane.b32.xlu0 %v475, 64
    %v934 = vpop.permute.xlu0 %933
    %935 = vrot.lane.b32.xlu0 %v476, 64
    %v936 = vpop.permute.xlu0 %935
    %937 = vrot.lane.b32.xlu0 %v477, 64
    %v938 = vpop.permute.xlu0 %937
    %939 = vrot.lane.b32.xlu0 %v478, 64
    %v940 = vpop.permute.xlu0 %939
    %941 = vrot.lane.b32.xlu0 %v479, 64
    %v942 = vpop.permute.xlu0 %941
    %943 = vrot.lane.b32.xlu0 %v480, 64
    %v944 = vpop.permute.xlu0 %943
    %945 = vrot.lane.b32.xlu0 %v481, 64
    %v946 = vpop.permute.xlu0 %945
    %947 = vrot.lane.b32.xlu0 %v482, 64
    %v948 = vpop.permute.xlu0 %947
    %949 = vrot.lane.b32.xlu0 %v483, 64
    %v950 = vpop.permute.xlu0 %949
    %951 = vrot.lane.b32.xlu0 %v484, 64
    %v952 = vpop.permute.xlu0 %951
    %953 = vrot.lane.b32.xlu0 %v485, 64
    %v954 = vpop.permute.xlu0 %953
    %955 = vrot.lane.b32.xlu0 %v486, 64
    %v956 = vpop.permute.xlu0 %955
    %957 = vrot.lane.b32.xlu0 %v487, 64
    %v958 = vpop.permute.xlu0 %957
    %959 = vrot.lane.b32.xlu0 %v488, 64
    %v960 = vpop.permute.xlu0 %959
    %961 = vrot.lane.b32.xlu0 %v489, 64
    %v962 = vpop.permute.xlu0 %961
    %963 = vrot.lane.b32.xlu0 %v490, 64
    %v964 = vpop.permute.xlu0 %963
    %965 = vrot.lane.b32.xlu0 %v491, 64
    %v966 = vpop.permute.xlu0 %965
    %967 = vrot.lane.b32.xlu0 %v492, 64
    %v968 = vpop.permute.xlu0 %967
    %969 = vrot.lane.b32.xlu0 %v493, 64
    %v970 = vpop.permute.xlu0 %969
    %971 = vrot.lane.b32.xlu0 %v494, 64
    %v972 = vpop.permute.xlu0 %971
    %973 = vrot.lane.b32.xlu0 %v495, 64
    %v974 = vpop.permute.xlu0 %973
    %975 = vrot.lane.b32.xlu0 %v496, 64
    %v976 = vpop.permute.xlu0 %975
    %977 = vrot.lane.b32.xlu0 %v497, 64
    %v978 = vpop.permute.xlu0 %977
    %979 = vrot.lane.b32.xlu0 %v498, 64
    %v980 = vpop.permute.xlu0 %979
    %981 = vrot.lane.b32.xlu0 %v499, 64
    %v982 = vpop.permute.xlu0 %981
    %983 = vrot.lane.b32.xlu0 %v500, 64
    %v984 = vpop.permute.xlu0 %983
    %985 = vrot.lane.b32.xlu0 %v501, 64
    %v986 = vpop.permute.xlu0 %985
    %987 = vrot.lane.b32.xlu0 %v502, 64
    %v988 = vpop.permute.xlu0 %987
    %989 = vrot.lane.b32.xlu0 %v503, 64
    %v990 = vpop.permute.xlu0 %989
    %991 = vrot.lane.b32.xlu0 %v504, 64
    %v992 = vpop.permute.xlu0 %991
    %993 = vrot.lane.b32.xlu0 %v505, 64
    %v994 = vpop.permute.xlu0 %993
    %v1027 = vmul.f32 %v470, %v932
    %v1028 = vmul.f32 %v471, %v934
    %v1029 = vmul.f32 %v472, %v936
    %v1030 = vmul.f32 %v473, %v938
    %v1031 = vmul.f32 %v470, %v940
    %v1032 = vmul.f32 %v471, %v942
    %v1033 = vmul.f32 %v472, %v944
    %v1034 = vmul.f32 %v473, %v946
    %v1035 = vmul.f32 %v470, %v948
    %v1036 = vmul.f32 %v471, %v950
    %v1037 = vmul.f32 %v472, %v952
    %v1038 = vmul.f32 %v473, %v954
    %v1039 = vmul.f32 %v470, %v956
    %v1040 = vmul.f32 %v471, %v958
    %v1041 = vmul.f32 %v472, %v960
    %v1042 = vmul.f32 %v473, %v962
    %v1043 = vmul.f32 %v470, %v964
    %v1044 = vmul.f32 %v471, %v966
    %v1045 = vmul.f32 %v472, %v968
    %v1046 = vmul.f32 %v473, %v970
    %v1047 = vmul.f32 %v470, %v972
    %v1048 = vmul.f32 %v471, %v974
    %v1049 = vmul.f32 %v472, %v976
    %v1050 = vmul.f32 %v473, %v978
    %v1051 = vmul.f32 %v470, %v980
    %v1052 = vmul.f32 %v471, %v982
    %v1053 = vmul.f32 %v472, %v984
    %v1054 = vmul.f32 %v473, %v986
    %v1055 = vmul.f32 %v470, %v988
    %v1056 = vmul.f32 %v471, %v990
    %v1057 = vmul.f32 %v472, %v992
    %v1058 = vmul.f32 %v473, %v994
    %1091 = vrot.lane.b32.xlu0 %v1027, 64
    %v1092 = vpop.permute.xlu0 %1091
    %1093 = vrot.lane.b32.xlu0 %v1028, 64
    %v1094 = vpop.permute.xlu0 %1093
    %1095 = vrot.lane.b32.xlu0 %v1029, 64
    %v1096 = vpop.permute.xlu0 %1095
    %1097 = vrot.lane.b32.xlu0 %v1030, 64
    %v1098 = vpop.permute.xlu0 %1097
    %1099 = vrot.lane.b32.xlu0 %v1031, 64
    %v1100 = vpop.permute.xlu0 %1099
    %1101 = vrot.lane.b32.xlu0 %v1032, 64
    %v1102 = vpop.permute.xlu0 %1101
    %1103 = vrot.lane.b32.xlu0 %v1033, 64
    %v1104 = vpop.permute.xlu0 %1103
    %1105 = vrot.lane.b32.xlu0 %v1034, 64
    %v1106 = vpop.permute.xlu0 %1105
    %1107 = vrot.lane.b32.xlu0 %v1035, 64
    %v1108 = vpop.permute.xlu0 %1107
    %1109 = vrot.lane.b32.xlu0 %v1036, 64
    %v1110 = vpop.permute.xlu0 %1109
    %1111 = vrot.lane.b32.xlu0 %v1037, 64
    %v1112 = vpop.permute.xlu0 %1111
    %1113 = vrot.lane.b32.xlu0 %v1038, 64
    %v1114 = vpop.permute.xlu0 %1113
    %1115 = vrot.lane.b32.xlu0 %v1039, 64
    %v1116 = vpop.permute.xlu0 %1115
    %1117 = vrot.lane.b32.xlu0 %v1040, 64
    %v1118 = vpop.permute.xlu0 %1117
    %1119 = vrot.lane.b32.xlu0 %v1041, 64
    %v1120 = vpop.permute.xlu0 %1119
    %1121 = vrot.lane.b32.xlu0 %v1042, 64
    %v1122 = vpop.permute.xlu0 %1121
    %1123 = vrot.lane.b32.xlu0 %v1043, 64
    %v1124 = vpop.permute.xlu0 %1123
    %1125 = vrot.lane.b32.xlu0 %v1044, 64
    %v1126 = vpop.permute.xlu0 %1125
    %1127 = vrot.lane.b32.xlu0 %v1045, 64
    %v1128 = vpop.permute.xlu0 %1127
    %1129 = vrot.lane.b32.xlu0 %v1046, 64
    %v1130 = vpop.permute.xlu0 %1129
    %1131 = vrot.lane.b32.xlu0 %v1047, 64
    %v1132 = vpop.permute.xlu0 %1131
    %1133 = vrot.lane.b32.xlu0 %v1048, 64
    %v1134 = vpop.permute.xlu0 %1133
    %1135 = vrot.lane.b32.xlu0 %v1049, 64
    %v1136 = vpop.permute.xlu0 %1135
    %1137 = vrot.lane.b32.xlu0 %v1050, 64
    %v1138 = vpop.permute.xlu0 %1137
    %1139 = vrot.lane.b32.xlu0 %v1051, 64
    %v1140 = vpop.permute.xlu0 %1139
    %1141 = vrot.lane.b32.xlu0 %v1052, 64
    %v1142 = vpop.permute.xlu0 %1141
    %1143 = vrot.lane.b32.xlu0 %v1053, 64
    %v1144 = vpop.permute.xlu0 %1143
    %1145 = vrot.lane.b32.xlu0 %v1054, 64
    %v1146 = vpop.permute.xlu0 %1145
    %1147 = vrot.lane.b32.xlu0 %v1055, 64
    %v1148 = vpop.permute.xlu0 %1147
    %1149 = vrot.lane.b32.xlu0 %v1056, 64
    %v1150 = vpop.permute.xlu0 %1149
    %1151 = vrot.lane.b32.xlu0 %v1057, 64
    %v1152 = vpop.permute.xlu0 %1151
    %1153 = vrot.lane.b32.xlu0 %v1058, 64
    %v1154 = vpop.permute.xlu0 %1153
    %v1187 = vsel %vm246, %v1092, %v539
    %v1188 = vsel %vm246, %v1094, %v541
    %v1189 = vsel %vm246, %v1096, %v543
    %v1190 = vsel %vm246, %v1098, %v545
    %v1191 = vsel %vm246, %v1100, %v547
    %v1192 = vsel %vm246, %v1102, %v549
    %v1193 = vsel %vm246, %v1104, %v551
    %v1194 = vsel %vm246, %v1106, %v553
    %v1195 = vsel %vm246, %v1108, %v555
    %v1196 = vsel %vm246, %v1110, %v557
    %v1197 = vsel %vm246, %v1112, %v559
    %v1198 = vsel %vm246, %v1114, %v561
    %v1199 = vsel %vm246, %v1116, %v563
    %v1200 = vsel %vm246, %v1118, %v565
    %v1201 = vsel %vm246, %v1120, %v567
    %v1202 = vsel %vm246, %v1122, %v569
    %v1203 = vsel %vm246, %v1124, %v571
    %v1204 = vsel %vm246, %v1126, %v573
    %v1205 = vsel %vm246, %v1128, %v575
    %v1206 = vsel %vm246, %v1130, %v577
    %v1207 = vsel %vm246, %v1132, %v579
    %v1208 = vsel %vm246, %v1134, %v581
    %v1209 = vsel %vm246, %v1136, %v583
    %v1210 = vsel %vm246, %v1138, %v585
    %v1211 = vsel %vm246, %v1140, %v587
    %v1212 = vsel %vm246, %v1142, %v589
    %v1213 = vsel %vm246, %v1144, %v591
    %v1214 = vsel %vm246, %v1146, %v593
    %v1215 = vsel %vm246, %v1148, %v595
    %v1216 = vsel %vm246, %v1150, %v597
    %v1217 = vsel %vm246, %v1152, %v599
    %v1218 = vsel %vm246, %v1154, %v601
    %1219 = vmatprep.subr.mxu0 0.0
    %1220 = vmatpush1.msra.mxu0 %v1187
    %1221 = vmatprep.subr.mxu0 0.0
    %1222 = vmatpush1.msra.mxu0 %v1188
    %1223 = vmatprep.subr.mxu0 0.0
    %1224 = vmatpush1.msra.mxu0 %v1189
    %1225 = vmatprep.subr.mxu0 0.0
    %1226 = vmatpush1.msra.mxu0 %v1190
    %1227 = vmatprep.subr.mxu0 0.0
    %1228 = vmatpush1.msra.mxu0 %v1191
    %1229 = vmatprep.subr.mxu0 0.0
    %1230 = vmatpush1.msra.mxu0 %v1192
    %1231 = vmatprep.subr.mxu0 0.0
    %1232 = vmatpush1.msra.mxu0 %v1193
    %1233 = vmatprep.subr.mxu0 0.0
    %1234 = vmatpush1.msra.mxu0 %v1194
    %1235 = vmatprep.subr.mxu0 0.0
    %1236 = vmatpush1.msra.mxu0 %v1195
    %1237 = vmatprep.subr.mxu0 0.0
    %1238 = vmatpush1.msra.mxu0 %v1196
    %1239 = vmatprep.subr.mxu0 0.0
    %1240 = vmatpush1.msra.mxu0 %v1197
    %1241 = vmatprep.subr.mxu0 0.0
    %1242 = vmatpush1.msra.mxu0 %v1198
    %1243 = vmatprep.subr.mxu0 0.0
    %1244 = vmatpush1.msra.mxu0 %v1199
    %1245 = vmatprep.subr.mxu0 0.0
    %1246 = vmatpush1.msra.mxu0 %v1200
    %1247 = vmatprep.subr.mxu0 0.0
    %1248 = vmatpush1.msra.mxu0 %v1201
    %1249 = vmatprep.subr.mxu0 0.0
    %1250 = vmatpush1.msra.mxu0 %v1202
    %1251 = vmatprep.subr.mxu0 0.0
    %1252 = vmatpush1.msra.mxu0 %v1203
    %1253 = vmatprep.subr.mxu0 0.0
    %1254 = vmatpush1.msra.mxu0 %v1204
    %1255 = vmatprep.subr.mxu0 0.0
    %1256 = vmatpush1.msra.mxu0 %v1205
    %1257 = vmatprep.subr.mxu0 0.0
    %1258 = vmatpush1.msra.mxu0 %v1206
    %1259 = vmatprep.subr.mxu0 0.0
    %1260 = vmatpush1.msra.mxu0 %v1207
    %1261 = vmatprep.subr.mxu0 0.0
    %1262 = vmatpush1.msra.mxu0 %v1208
    %1263 = vmatprep.subr.mxu0 0.0
    %1264 = vmatpush1.msra.mxu0 %v1209
    %1265 = vmatprep.subr.mxu0 0.0
    %1266 = vmatpush1.msra.mxu0 %v1210
    %1267 = vmatprep.subr.mxu0 0.0
    %1268 = vmatpush1.msra.mxu0 %v1211
    %1269 = vmatprep.subr.mxu0 0.0
    %1270 = vmatpush1.msra.mxu0 %v1212
    %1271 = vmatprep.subr.mxu0 0.0
    %1272 = vmatpush1.msra.mxu0 %v1213
    %1273 = vmatprep.subr.mxu0 0.0
    %1274 = vmatpush1.msra.mxu0 %v1214
    %1275 = vmatprep.subr.mxu0 0.0
    %1276 = vmatpush1.msra.mxu0 %v1215
    %1277 = vmatprep.subr.mxu0 0.0
    %1278 = vmatpush1.msra.mxu0 %v1216
    %1279 = vmatprep.subr.mxu0 0.0
    %1280 = vmatpush1.msra.mxu0 %v1217
    %1281 = vmatprep.subr.mxu0 0.0
    %1282 = vmatpush1.msra.mxu0 %v1218
    %1283 = vmatprep.mubr.f32.mxu0 %v926
    %1284 = vmatmul.mubr.f32.gmra.mrb[0].mxu0 %v924
    %v1285 = vpop.f32.mrb[0].mxu0
    %v1286 = vadd.f32 0.0, %v1285
    %v1287 = vpop.f32.mrb[0].mxu0
    %1288 = vmatprep.mubr.f32.mxu0 %v930
    %1289 = vmatmul.mubr.f32.gmra.mrb[0].mxu0 %v928
    %v1290 = vpop.f32.mrb[0].mxu0
    %v1291 = vadd.f32 0.0, %v1290
    %v1292 = vpop.f32.mrb[0].mxu0
    %1293 = vdwg.mxu0
    %v1294 = vrcp.pop %v1286
    %v1295 = vrcp.pop %v1291
    %1298 = vrot.lane.b32.xlu0 %v1294, 96
    %v1299 = vpop.permute.xlu0 %1298
    %1300 = vrot.lane.b32.xlu0 %v1295, 96
    %v1301 = vpop.permute.xlu0 %1300
    %v1304 = vmul.f32 %v1286, %v1299
    %v1305 = vmul.f32 %v1291, %v1301
    %v1306 = vlaneseq
    %v1307 = vshrl.u32 %v1306, 7
    %v1308 = vsub.s32 3, %v1307
    %v1309 = vrot.slane %v330, %v1308
    %1314 = vrot.lane.b32.xlu0 %v326, 32
    %v1315 = vpop.permute.xlu0 %1314
    %1316 = vrot.lane.b32.xlu0 %v327, 32
    %v1317 = vpop.permute.xlu0 %1316
    %1318 = vrot.lane.b32.xlu0 %v328, 32
    %v1319 = vpop.permute.xlu0 %1318
    %1320 = vrot.lane.b32.xlu0 %v329, 32
    %v1321 = vpop.permute.xlu0 %1320
    %v1327 = vsel %vm246, %v1304, 0
    %v1330 = vsel %vm246, %v1305, 0
    %1332 = vmatprep.subr.mxu0 0.0
    %1333 = vmatpush1.msra.mxu0 %v1315
    %1334 = vmatprep.subr.mxu0 0.0
    %1335 = vmatpush1.msra.mxu0 %v1317
    %1336 = vmatprep.subr.mxu0 0.0
    %1337 = vmatpush1.msra.mxu0 %v1319
    %1338 = vmatprep.subr.mxu0 0.0
    %1339 = vmatpush1.msra.mxu0 %v1321
    %1340 = vmatprep.subr.mxu0 0.0
    %1341 = vmatpush1.msra.mxu0 0.0
    %1342 = vmatprep.subr.mxu0 0.0
    %1343 = vmatpush1.msra.mxu0 0.0
    %1344 = vmatprep.subr.mxu0 0.0
    %1345 = vmatpush1.msra.mxu0 0.0
    %1346 = vmatprep.subr.mxu0 0.0
    %1347 = vmatpush1.msra.mxu0 0.0
    %1348 = vmatprep.subr.mxu0 0.0
    %1349 = vmatpush1.msra.mxu0 0.0
    %1350 = vmatprep.subr.mxu0 0.0
    %1351 = vmatpush1.msra.mxu0 0.0
    %1352 = vmatprep.subr.mxu0 0.0
    %1353 = vmatpush1.msra.mxu0 0.0
    %1354 = vmatprep.subr.mxu0 0.0
    %1355 = vmatpush1.msra.mxu0 0.0
    %1356 = vmatprep.subr.mxu0 0.0
    %1357 = vmatpush1.msra.mxu0 0.0
    %1358 = vmatprep.subr.mxu0 0.0
    %1359 = vmatpush1.msra.mxu0 0.0
    %1360 = vmatprep.subr.mxu0 0.0
    %1361 = vmatpush1.msra.mxu0 0.0
    %1362 = vmatprep.subr.mxu0 0.0
    %1363 = vmatpush1.msra.mxu0 0.0
    %1364 = vmatprep.subr.mxu0 0.0
    %1365 = vmatpush1.msra.mxu0 0.0
    %1366 = vmatprep.subr.mxu0 0.0
    %1367 = vmatpush1.msra.mxu0 0.0
    %1368 = vmatprep.subr.mxu0 0.0
    %1369 = vmatpush1.msra.mxu0 0.0
    %1370 = vmatprep.subr.mxu0 0.0
    %1371 = vmatpush1.msra.mxu0 0.0
    %1372 = vmatprep.subr.mxu0 0.0
    %1373 = vmatpush1.msra.mxu0 0.0
    %1374 = vmatprep.subr.mxu0 0.0
    %1375 = vmatpush1.msra.mxu0 0.0
    %1376 = vmatprep.subr.mxu0 0.0
    %1377 = vmatpush1.msra.mxu0 0.0
    %1378 = vmatprep.subr.mxu0 0.0
    %1379 = vmatpush1.msra.mxu0 0.0
    %1380 = vmatprep.subr.mxu0 0.0
    %1381 = vmatpush1.msra.mxu0 0.0
    %1382 = vmatprep.subr.mxu0 0.0
    %1383 = vmatpush1.msra.mxu0 0.0
    %1384 = vmatprep.subr.mxu0 0.0
    %1385 = vmatpush1.msra.mxu0 0.0
    %1386 = vmatprep.subr.mxu0 0.0
    %1387 = vmatpush1.msra.mxu0 0.0
    %1388 = vmatprep.subr.mxu0 0.0
    %1389 = vmatpush1.msra.mxu0 0.0
    %1390 = vmatprep.subr.mxu0 0.0
    %1391 = vmatpush1.msra.mxu0 0.0
    %1392 = vmatprep.subr.mxu0 0.0
    %1393 = vmatpush1.msra.mxu0 0.0
    %1394 = vmatprep.subr.mxu0 0.0
    %1395 = vmatpush1.msra.mxu0 0.0
    %1396 = vmatprep.mubr.f32.mxu0 0.0
    %1397 = vmatmul.mubr.f32.gmra.mrb[0].mxu0 %v1327
    %v1398 = vpop.f32.mrb[0].mxu0
    %v1399 = vadd.f32 %v1309, %v1398
    %v1400 = vpop.f32.mrb[0].mxu0
    %1401 = vmatprep.mubr.f32.mxu0 0.0
    %1402 = vmatmul.mubr.f32.gmra.mrb[0].mxu0 %v1330
    %v1403 = vpop.f32.mrb[0].mxu0
    %v1404 = vadd.f32 %v1309, %v1403
    %v1405 = vpop.f32.mrb[0].mxu0
    %1406 = vdwg.mxu0
    %v1407 = vadd.f32 %v27, %v1399
    %v1408 = vadd.f32 %v28, %v1404
    %1409 = vst.msk [vmem:[#allocation2] sm:$0xff] %vm246, %v1407
    %1410 = vst.msk [vmem:[#allocation2 + $0x8] sm:$0xff] %vm246, %v1408
    // Predicated region
    $region30: #{tpu_custom_call.1} parent=1 // pred_check
      _
    $region31: #{tpu_custom_call.1} parent=1 // pred_check_branch
      %1412 = sbr.rel (0) target = $region33
    $region32: #{tpu_custom_call.1} parent=1 // pred_region
      %s1414 = ssub.s32 256, 256
      %1415 = vsyncadd [#allocation3], %s1414
      %s1416 = sshll.u32 [#allocation2], 4
      %s1417 = int_to_ptr.vmem [resolvable:$true] %s1416
      %1422 = dma.vmem_to_hbm [thread:$0]  %s1417, 256, %s7, [#allocation3], 128, 128, 8
    $region33: #{tpu_custom_call.1} parent=1 // pred_fallthru
      _
    // Predicated region
    $region34: #{tpu_custom_call.1} parent=1 // pred_check
      _
    $region35: #{tpu_custom_call.1} parent=1 // pred_check_branch
      %1424 = sbr.rel (0) target = $region37
    $region36: #{tpu_custom_call.1} parent=1 // pred_region
      %1425 = dma.done [#allocation3], 256
    $region37: #{tpu_custom_call.1} parent=1 // pred_fallthru
      _
    %1426 = vsyncpa [#allocation3], 1

</llo_original>
